<compile_context>
chip_gen: v7x
topology: tpu7x:2x2x1
jax: 0.10.0
libtpu: 0.0.40
codegen_flags: <defaults>
</compile_context>

<pallas_src>
import jax
import jax.numpy as jnp
from jax.experimental import pallas as pl
from jax.experimental.pallas import tpu as pltpu


# ----------------------------- plain-JAX glue --------------------------------

def dense_knn_graph(x_cn, k, dilation=1):
    """DenseDilatedKnnGraph (stochastic=False) on node-major data.
    x_cn: (B, C, N) -> neighbor indices (B, N, k)."""
    norm = jnp.sqrt(jnp.sum(x_cn * x_cn, axis=1, keepdims=True))
    xn = x_cn / jnp.maximum(norm, 1e-12)
    sq = jnp.sum(xn * xn, axis=1)                                    # (B, N)
    dist = (sq[:, :, None]
            - 2.0 * jnp.einsum('bcn,bcm->bnm', xn, xn)
            + sq[:, None, :])                                        # (B, N, N)
    _, nbr = jax.lax.top_k(-dist, k * dilation)                      # (B, N, k*d)
    return nbr[..., ::dilation].astype(jnp.int32)                    # (B, N, k)


def batched_index_select(x, idx):
    """x: (B,C,N,1), idx: (B,N,K) -> (B,C,N,K); out[b,c,n,k] = x[b,c,idx[b,n,k],0]."""
    B, C, _, _ = x.shape
    _, N, K = idx.shape
    xf = x[..., 0]
    idx_f = jnp.broadcast_to(idx.reshape(B, 1, N * K), (B, C, N * K))
    return jnp.take_along_axis(xf, idx_f, axis=2).reshape(B, C, N, K)


# ------------------------------ Pallas kernel --------------------------------

def _edgeconv_kernel(xj_ref, x_ref, wi_ref, wj_ref, b_ref, o_ref):
    # xj_ref: (1, K, C, NT)  neighbor features (all K for this node tile)
    # x_ref : (1, C, NT)     center features
    # wi/wj : (Cout, C)      b_ref: (Cout, 1)
    # o_ref : (1, Cout, NT)  lane-dense along NT
    x_i = x_ref[0]                                                   # (C, NT)
    wj = wj_ref[...]                                                 # (Cout, C)
    n_k = xj_ref.shape[1]

    # Running max over K of W_j @ (x_j - x_i); K is small and static -> unrolled.
    acc = jnp.dot(wj, xj_ref[0, 0] - x_i,
                  preferred_element_type=jnp.float32)                # (Cout, NT)
    for k in range(1, n_k):
        acc = jnp.maximum(
            acc,
            jnp.dot(wj, xj_ref[0, k] - x_i,
                    preferred_element_type=jnp.float32))

    # K-independent part + bias, ReLU after max (exact: ReLU is monotone).
    base = jnp.dot(wi_ref[...], x_i,
                   preferred_element_type=jnp.float32) + b_ref[...]  # (Cout, NT)
    o_ref[0] = jnp.maximum(base + acc, 0.0).astype(o_ref.dtype)


def edge_conv_pallas(x_cn, nbr_idx, W, bias, n_tile=None,
                     vmem_budget=20 * 1024 * 1024):
    """EdgeConv2d hot path in node-major layout.
    x_cn: (B, C, N) f32, nbr_idx: (B, N, K) int32 (center index is implicitly n),
    W: (Cout, 2C), bias: (Cout,).  Returns (B, Cout, N) f32."""
    B, C, N = x_cn.shape
    K = nbr_idx.shape[-1]
    Cout = W.shape[0]
    assert W.shape == (Cout, 2 * C), W.shape

    # ---- tile selection: lane-dense n_tile, padded N, VMEM-budget capped ----
    if n_tile is None:
        n_tile = None
        for cand in (1024, 512, 256):
            if N >= cand:
                n_tile = cand
                break
        if n_tile is None:
            n_tile = max(128, int(pl.next_power_of_2(N)))

    def working_set_bytes(nt):
        # double-buffered x_j, x, out blocks + weights/bias (f32)
        return 4 * (2 * K * C * nt + 2 * C * nt + 2 * Cout * nt
                    + 2 * 2 * C * Cout + Cout)

    while n_tile > 128 and working_set_bytes(n_tile) > vmem_budget:
        n_tile //= 2

    n_blocks = pl.cdiv(N, n_tile)
    n_pad = n_blocks * n_tile

    x_cn = x_cn.astype(jnp.float32)
    if n_pad != N:
        x_cn = jnp.pad(x_cn, ((0, 0), (0, 0), (0, n_pad - N)))

    # ---- neighbor gather (XLA glue), emitted directly in (B, K, C, N) -------
    nbr_t = jnp.transpose(nbr_idx, (0, 2, 1))                        # (B, K, N)
    if n_pad != N:
        nbr_t = jnp.pad(nbr_t, ((0, 0), (0, 0), (0, n_pad - N)))
    x_j = jnp.take_along_axis(x_cn[:, None, :, :],                   # (B,1,C,Np)
                              nbr_t[:, :, None, :], axis=3)          # (B,K,C,Np)

    w_i = W[:, :C].astype(jnp.float32)                               # (Cout, C)
    w_j = W[:, C:].astype(jnp.float32)                               # (Cout, C)
    b2d = bias.reshape(Cout, 1).astype(jnp.float32)

    vmem_limit = int(min(32 * 1024 * 1024,
                         max(16 * 1024 * 1024, 2 * working_set_bytes(n_tile))))

    cost = pl.CostEstimate(
        flops=2 * B * n_pad * C * Cout * (K + 1),
        transcendentals=0,
        bytes_accessed=4 * (x_j.size + x_cn.size + B * Cout * n_pad
                            + 2 * C * Cout + Cout),
    )

    out = pl.pallas_call(
        _edgeconv_kernel,
        out_shape=jax.ShapeDtypeStruct((B, Cout, n_pad), jnp.float32),
        grid_spec=pltpu.PrefetchScalarGridSpec(
            num_scalar_prefetch=0,
            grid=(B, n_blocks),
            in_specs=[
                pl.BlockSpec((1, K, C, n_tile), lambda b, nt: (b, 0, 0, nt)),
                pl.BlockSpec((1, C, n_tile), lambda b, nt: (b, 0, nt)),
                pl.BlockSpec((Cout, C), lambda b, nt: (0, 0)),
                pl.BlockSpec((Cout, C), lambda b, nt: (0, 0)),
                pl.BlockSpec((Cout, 1), lambda b, nt: (0, 0)),
            ],
            out_specs=pl.BlockSpec((1, Cout, n_tile), lambda b, nt: (b, 0, nt)),
        ),
        compiler_params=pltpu.CompilerParams(
            dimension_semantics=("parallel", "parallel"),
            vmem_limit_bytes=vmem_limit,
        ),
        cost_estimate=cost,
    )(x_j, x_cn, w_i, w_j, b2d)

    return out[:, :, :N]                                             # (B, Cout, N)


def dy_graph_conv2d(x_img, W, bias, kernel_size=9, dilation=1):
    """DyGraphConv2d forward.  x_img: (B,C,H,W) -> (B,Cout,H,W).
    Also returns edge_index (2,B,N,K) for reference checking."""
    B, C, H, Wd = x_img.shape
    N = H * Wd
    x_cn = x_img.reshape(B, C, N)                                    # node-major

    nbr = dense_knn_graph(x_cn, kernel_size, dilation)               # (B, N, K)
    center = jnp.broadcast_to(jnp.arange(N, dtype=nbr.dtype)[None, :, None],
                              nbr.shape)
    edge_index = jnp.stack([nbr, center], axis=0)                    # (2,B,N,K)

    out_bcn = edge_conv_pallas(x_cn, nbr, W, bias)                   # (B,Cout,N)
    return out_bcn.reshape(B, -1, H, Wd), edge_index


# ---------------------------- pure-JAX reference ------------------------------

def ref_forward(x_img, edge_index, W, bias):
    B, C, H, Wd = x_img.shape
    x = x_img.reshape(B, C, H * Wd, 1)
    x_i = batched_index_select(x, edge_index[1])
    x_j = batched_index_select(x, edge_index[0])
    f = jnp.concatenate([x_i, x_j - x_i], axis=1)                    # (B,2C,N,K)
    y = jnp.einsum('oc,bcnk->bonk', W, f) + bias[None, :, None, None]
    y = jnp.maximum(y, 0.0)
    y = jnp.max(y, axis=-1, keepdims=True)                           # (B,Cout,N,1)
    return y.reshape(B, -1, H, Wd)


# ----------------------------------- main -------------------------------------

if __name__ == "__main__":
    B, C, H, Wimg = 2, 4, 16, 16       # N = H*W = 256 nodes
    K, Cout = 9, 32                    # kernel_size=9 (module default)

    key = jax.random.PRNGKey(0)
    kx, kw, kb = jax.random.split(key, 3)

    x = jax.random.normal(kx, (B, C, H, Wimg), dtype=jnp.float32)
    W = 0.1 * jax.random.normal(kw, (Cout, 2 * C), dtype=jnp.float32)  # 1x1 conv weight
    bias = 0.1 * jax.random.normal(kb, (Cout,), dtype=jnp.float32)

    out, edge_index = dy_graph_conv2d(x, W, bias, kernel_size=K)
    out = jax.block_until_ready(out)

    ref = ref_forward(x, edge_index, W, bias)
    assert out.shape == (B, Cout, H, Wimg), out.shape
    max_err = float(jnp.max(jnp.abs(out - ref)))
    assert jnp.allclose(out, ref, atol=2e-5, rtol=1e-5), max_err

    print("KERNEL_OK")
</pallas_src>

<mosaic_0001>
module attributes {stable_mosaic.version = 11 : i64} {
  func.func @_edgeconv_kernel(%arg0: i32, %arg1: i32, %arg2: memref<1x9x4x256xf32, #tpu.memory_space<vmem>>, %arg3: memref<1x4x256xf32, #tpu.memory_space<vmem>>, %arg4: memref<32x4xf32, #tpu.memory_space<vmem>>, %arg5: memref<32x4xf32, #tpu.memory_space<vmem>>, %arg6: memref<32x1xf32, #tpu.memory_space<vmem>>, %arg7: memref<1x32x256xf32, #tpu.memory_space<vmem>>) attributes {dimension_semantics = [#tpu.dimension_semantics<parallel>, #tpu.dimension_semantics<parallel>], iteration_bounds = array<i64: 2, 1>, scalar_prefetch = 0 : i64, scratch_operands = 0 : i64, tpu.core_type = #tpu.core_type<tc>, window_params = [{transform_indices = @transform_0, window_bounds = array<i64: 1, 9, 4, 256>}, {transform_indices = @transform_1, window_bounds = array<i64: 1, 4, 256>}, {pipeline_mode = #tpu.pipeline_mode<synchronous>, transform_indices = @transform_2, window_bounds = array<i64: 32, 4>}, {pipeline_mode = #tpu.pipeline_mode<synchronous>, transform_indices = @transform_3, window_bounds = array<i64: 32, 4>}, {pipeline_mode = #tpu.pipeline_mode<synchronous>, transform_indices = @transform_4, window_bounds = array<i64: 32, 1>}, {transform_indices = @transform_5, window_bounds = array<i64: 1, 32, 256>}]} {
    %c0 = arith.constant 0 : index
    %c0_0 = arith.constant 0 : index
    %c0_1 = arith.constant 0 : index
    %0 = vector.load %arg3[%c0, %c0_0, %c0_1] : memref<1x4x256xf32, #tpu.memory_space<vmem>>, vector<1x4x256xf32>
    %1 = vector.shape_cast %0 : vector<1x4x256xf32> to vector<4x256xf32>
    %c0_2 = arith.constant 0 : index
    %c0_3 = arith.constant 0 : index
    %2 = vector.load %arg5[%c0_2, %c0_3] : memref<32x4xf32, #tpu.memory_space<vmem>>, vector<32x4xf32>
    %c0_4 = arith.constant 0 : index
    %c0_5 = arith.constant 0 : index
    %c0_6 = arith.constant 0 : index
    %c0_7 = arith.constant 0 : index
    %3 = vector.load %arg2[%c0_4, %c0_5, %c0_6, %c0_7] : memref<1x9x4x256xf32, #tpu.memory_space<vmem>>, vector<1x1x4x256xf32>
    %4 = vector.shape_cast %3 : vector<1x1x4x256xf32> to vector<4x256xf32>
    %5 = arith.subf %4, %1 : vector<4x256xf32>
    %cst = arith.constant dense<0.000000e+00> : vector<32x256xf32>
    %6 = tpu.matmul %2, %5, %cst {dimension_numbers = #tpu.dot_dimension_numbers<[1], [0], [0], [1], [0, 0, 1, 1], [], []>} : vector<32x4xf32>, vector<4x256xf32>, vector<32x256xf32> -> vector<32x256xf32>
    %c0_8 = arith.constant 0 : index
    %c1 = arith.constant 1 : index
    %c0_9 = arith.constant 0 : index
    %c0_10 = arith.constant 0 : index
    %7 = vector.load %arg2[%c0_8, %c1, %c0_9, %c0_10] : memref<1x9x4x256xf32, #tpu.memory_space<vmem>>, vector<1x1x4x256xf32>
    %8 = vector.shape_cast %7 : vector<1x1x4x256xf32> to vector<4x256xf32>
    %9 = arith.subf %8, %1 : vector<4x256xf32>
    %cst_11 = arith.constant dense<0.000000e+00> : vector<32x256xf32>
    %10 = tpu.matmul %2, %9, %cst_11 {dimension_numbers = #tpu.dot_dimension_numbers<[1], [0], [0], [1], [0, 0, 1, 1], [], []>} : vector<32x4xf32>, vector<4x256xf32>, vector<32x256xf32> -> vector<32x256xf32>
    %11 = arith.maximumf %6, %10 : vector<32x256xf32>
    %c0_12 = arith.constant 0 : index
    %c2 = arith.constant 2 : index
    %c0_13 = arith.constant 0 : index
    %c0_14 = arith.constant 0 : index
    %12 = vector.load %arg2[%c0_12, %c2, %c0_13, %c0_14] : memref<1x9x4x256xf32, #tpu.memory_space<vmem>>, vector<1x1x4x256xf32>
    %13 = vector.shape_cast %12 : vector<1x1x4x256xf32> to vector<4x256xf32>
    %14 = arith.subf %13, %1 : vector<4x256xf32>
    %cst_15 = arith.constant dense<0.000000e+00> : vector<32x256xf32>
    %15 = tpu.matmul %2, %14, %cst_15 {dimension_numbers = #tpu.dot_dimension_numbers<[1], [0], [0], [1], [0, 0, 1, 1], [], []>} : vector<32x4xf32>, vector<4x256xf32>, vector<32x256xf32> -> vector<32x256xf32>
    %16 = arith.maximumf %11, %15 : vector<32x256xf32>
    %c0_16 = arith.constant 0 : index
    %c3 = arith.constant 3 : index
    %c0_17 = arith.constant 0 : index
    %c0_18 = arith.constant 0 : index
    %17 = vector.load %arg2[%c0_16, %c3, %c0_17, %c0_18] : memref<1x9x4x256xf32, #tpu.memory_space<vmem>>, vector<1x1x4x256xf32>
    %18 = vector.shape_cast %17 : vector<1x1x4x256xf32> to vector<4x256xf32>
    %19 = arith.subf %18, %1 : vector<4x256xf32>
    %cst_19 = arith.constant dense<0.000000e+00> : vector<32x256xf32>
    %20 = tpu.matmul %2, %19, %cst_19 {dimension_numbers = #tpu.dot_dimension_numbers<[1], [0], [0], [1], [0, 0, 1, 1], [], []>} : vector<32x4xf32>, vector<4x256xf32>, vector<32x256xf32> -> vector<32x256xf32>
    %21 = arith.maximumf %16, %20 : vector<32x256xf32>
    %c0_20 = arith.constant 0 : index
    %c4 = arith.constant 4 : index
    %c0_21 = arith.constant 0 : index
    %c0_22 = arith.constant 0 : index
    %22 = vector.load %arg2[%c0_20, %c4, %c0_21, %c0_22] : memref<1x9x4x256xf32, #tpu.memory_space<vmem>>, vector<1x1x4x256xf32>
    %23 = vector.shape_cast %22 : vector<1x1x4x256xf32> to vector<4x256xf32>
    %24 = arith.subf %23, %1 : vector<4x256xf32>
    %cst_23 = arith.constant dense<0.000000e+00> : vector<32x256xf32>
    %25 = tpu.matmul %2, %24, %cst_23 {dimension_numbers = #tpu.dot_dimension_numbers<[1], [0], [0], [1], [0, 0, 1, 1], [], []>} : vector<32x4xf32>, vector<4x256xf32>, vector<32x256xf32> -> vector<32x256xf32>
    %26 = arith.maximumf %21, %25 : vector<32x256xf32>
    %c0_24 = arith.constant 0 : index
    %c5 = arith.constant 5 : index
    %c0_25 = arith.constant 0 : index
    %c0_26 = arith.constant 0 : index
    %27 = vector.load %arg2[%c0_24, %c5, %c0_25, %c0_26] : memref<1x9x4x256xf32, #tpu.memory_space<vmem>>, vector<1x1x4x256xf32>
    %28 = vector.shape_cast %27 : vector<1x1x4x256xf32> to vector<4x256xf32>
    %29 = arith.subf %28, %1 : vector<4x256xf32>
    %cst_27 = arith.constant dense<0.000000e+00> : vector<32x256xf32>
    %30 = tpu.matmul %2, %29, %cst_27 {dimension_numbers = #tpu.dot_dimension_numbers<[1], [0], [0], [1], [0, 0, 1, 1], [], []>} : vector<32x4xf32>, vector<4x256xf32>, vector<32x256xf32> -> vector<32x256xf32>
    %31 = arith.maximumf %26, %30 : vector<32x256xf32>
    %c0_28 = arith.constant 0 : index
    %c6 = arith.constant 6 : index
    %c0_29 = arith.constant 0 : index
    %c0_30 = arith.constant 0 : index
    %32 = vector.load %arg2[%c0_28, %c6, %c0_29, %c0_30] : memref<1x9x4x256xf32, #tpu.memory_space<vmem>>, vector<1x1x4x256xf32>
    %33 = vector.shape_cast %32 : vector<1x1x4x256xf32> to vector<4x256xf32>
    %34 = arith.subf %33, %1 : vector<4x256xf32>
    %cst_31 = arith.constant dense<0.000000e+00> : vector<32x256xf32>
    %35 = tpu.matmul %2, %34, %cst_31 {dimension_numbers = #tpu.dot_dimension_numbers<[1], [0], [0], [1], [0, 0, 1, 1], [], []>} : vector<32x4xf32>, vector<4x256xf32>, vector<32x256xf32> -> vector<32x256xf32>
    %36 = arith.maximumf %31, %35 : vector<32x256xf32>
    %c0_32 = arith.constant 0 : index
    %c7 = arith.constant 7 : index
    %c0_33 = arith.constant 0 : index
    %c0_34 = arith.constant 0 : index
    %37 = vector.load %arg2[%c0_32, %c7, %c0_33, %c0_34] : memref<1x9x4x256xf32, #tpu.memory_space<vmem>>, vector<1x1x4x256xf32>
    %38 = vector.shape_cast %37 : vector<1x1x4x256xf32> to vector<4x256xf32>
    %39 = arith.subf %38, %1 : vector<4x256xf32>
    %cst_35 = arith.constant dense<0.000000e+00> : vector<32x256xf32>
    %40 = tpu.matmul %2, %39, %cst_35 {dimension_numbers = #tpu.dot_dimension_numbers<[1], [0], [0], [1], [0, 0, 1, 1], [], []>} : vector<32x4xf32>, vector<4x256xf32>, vector<32x256xf32> -> vector<32x256xf32>
    %41 = arith.maximumf %36, %40 : vector<32x256xf32>
    %c0_36 = arith.constant 0 : index
    %c8 = arith.constant 8 : index
    %c0_37 = arith.constant 0 : index
    %c0_38 = arith.constant 0 : index
    %42 = vector.load %arg2[%c0_36, %c8, %c0_37, %c0_38] : memref<1x9x4x256xf32, #tpu.memory_space<vmem>>, vector<1x1x4x256xf32>
    %43 = vector.shape_cast %42 : vector<1x1x4x256xf32> to vector<4x256xf32>
    %44 = arith.subf %43, %1 : vector<4x256xf32>
    %cst_39 = arith.constant dense<0.000000e+00> : vector<32x256xf32>
    %45 = tpu.matmul %2, %44, %cst_39 {dimension_numbers = #tpu.dot_dimension_numbers<[1], [0], [0], [1], [0, 0, 1, 1], [], []>} : vector<32x4xf32>, vector<4x256xf32>, vector<32x256xf32> -> vector<32x256xf32>
    %46 = arith.maximumf %41, %45 : vector<32x256xf32>
    %c0_40 = arith.constant 0 : index
    %c0_41 = arith.constant 0 : index
    %47 = vector.load %arg4[%c0_40, %c0_41] : memref<32x4xf32, #tpu.memory_space<vmem>>, vector<32x4xf32>
    %cst_42 = arith.constant dense<0.000000e+00> : vector<32x256xf32>
    %48 = tpu.matmul %47, %1, %cst_42 {dimension_numbers = #tpu.dot_dimension_numbers<[1], [0], [0], [1], [0, 0, 1, 1], [], []>} : vector<32x4xf32>, vector<4x256xf32>, vector<32x256xf32> -> vector<32x256xf32>
    %c0_43 = arith.constant 0 : index
    %c0_44 = arith.constant 0 : index
    %49 = vector.load %arg6[%c0_43, %c0_44] : memref<32x1xf32, #tpu.memory_space<vmem>>, vector<32x1xf32>
    %50 = vector.broadcast %49 : vector<32x1xf32> to vector<32x256xf32>
    %51 = arith.addf %48, %50 : vector<32x256xf32>
    %52 = arith.addf %51, %46 : vector<32x256xf32>
    %cst_45 = arith.constant 0.000000e+00 : f32
    %53 = vector.broadcast %cst_45 : f32 to vector<32x256xf32>
    %54 = arith.maximumf %52, %53 : vector<32x256xf32>
    %c0_46 = arith.constant 0 : index
    %c0_47 = arith.constant 0 : index
    %c0_48 = arith.constant 0 : index
    %55 = vector.load %arg7[%c0_46, %c0_47, %c0_48] : memref<1x32x256xf32, #tpu.memory_space<vmem>>, vector<1x32x256xf32>
    %56 = vector.shape_cast %55 : vector<1x32x256xf32> to vector<32x256xf32>
    %57 = vector.shape_cast %54 : vector<32x256xf32> to vector<1x32x256xf32>
    tpu.vector_store %arg7[%c0_46, %c0_47, %c0_48], %57 {strides = array<i32>} : memref<1x32x256xf32, #tpu.memory_space<vmem>>, vector<1x32x256xf32>,
    return
  }
  func.func @transform_0(%arg0: i32, %arg1: i32) -> (i32, i32, i32, i32) {
    %c0_i32 = arith.constant 0 : i32
    %c0_i32_0 = arith.constant 0 : i32
    %c0_i32_1 = arith.constant 0 : i32
    return %arg0, %c0_i32, %c0_i32_0, %arg1 : i32, i32, i32, i32
  }
  func.func @transform_1(%arg0: i32, %arg1: i32) -> (i32, i32, i32) {
    %c0_i32 = arith.constant 0 : i32
    %c0_i32_0 = arith.constant 0 : i32
    return %arg0, %c0_i32, %arg1 : i32, i32, i32
  }
  func.func @transform_2(%arg0: i32, %arg1: i32) -> (i32, i32) {
    %c0_i32 = arith.constant 0 : i32
    %c0_i32_0 = arith.constant 0 : i32
    %c0_i32_1 = arith.constant 0 : i32
    return %c0_i32, %c0_i32_0 : i32, i32
  }
  func.func @transform_3(%arg0: i32, %arg1: i32) -> (i32, i32) {
    %c0_i32 = arith.constant 0 : i32
    %c0_i32_0 = arith.constant 0 : i32
    %c0_i32_1 = arith.constant 0 : i32
    return %c0_i32, %c0_i32_0 : i32, i32
  }
  func.func @transform_4(%arg0: i32, %arg1: i32) -> (i32, i32) {
    %c0_i32 = arith.constant 0 : i32
    %c0_i32_0 = arith.constant 0 : i32
    %c0_i32_1 = arith.constant 0 : i32
    return %c0_i32, %c0_i32_0 : i32, i32
  }
  func.func @transform_5(%arg0: i32, %arg1: i32) -> (i32, i32, i32) {
    %c0_i32 = arith.constant 0 : i32
    %c0_i32_0 = arith.constant 0 : i32
    return %arg0, %c0_i32, %arg1 : i32, i32, i32
  }
}

</mosaic_0001>

<llo_original>
// kernel: tpu_custom_call.1
$region0: #{tpu_custom_call.1}
  #allocation0 [shape = 'u32[]', space=smem, size = 0x4, offset = 0x4, fixed_abs, tag = 'smem constant byte address 0x4 - core index']
  #allocation1 [shape = 'u32[144,128]{1,0:T(1,128)}', space=vmem, size = 0x12000, scoped, tag = 'internal scratch']
  %s0 = inlined_call_operand.hbm [shape: f32[2,9,4,256], index: 0, kind: input, shape index: {}]
  %s1 = inlined_call_operand.vmem [shape: f32[2,4,256], index: 1, kind: input, shape index: {}]
  %s2 = inlined_call_operand.vmem [shape: f32[32,4], index: 2, kind: input, shape index: {}]
  %s3 = inlined_call_operand.vmem [shape: f32[32,4], index: 3, kind: input, shape index: {}]
  %s4 = inlined_call_operand.vmem [shape: f32[32,1], index: 4, kind: input, shape index: {}]
  %s5 = inlined_call_operand.hbm [shape: f32[2,32,256], index: 5, kind: output, shape index: {}]
  %s6 = sld [smem:[#allocation0]]
  $region57: #{tpu_custom_call.1} parent=0
    _
  %s8 = ssub.s32 1, %s6
  %s9 = scalar_select 0, %s8, %s6
  $region1: #{tpu_custom_call.1} parent=0
    #allocation2 [shape = 'u8[73728]{0}', space=vmem, size = 0x12000, scoped, tag = 'input window, operand 0']
    #allocation3 [shape = 's32[2]{0}', space=sflag, size = 0x8, scoped, tag = 'scoped memory for tpu_custom_call.1']
    #allocation4 [shape = 's32[2]{0}', space=sflag, size = 0x8, scoped, tag = 'scoped memory for tpu_custom_call.1']
    #allocation5 [shape = 'u8[65536]{0}', space=vmem, size = 0x10000, scoped, tag = 'output window, operand 0']
    %10 = vsyncpa [#allocation3], 0
    %s11 = scalar_lea.sflag [#allocation3], 1
    %12 = vsyncpa %s11, 0
    %13 = vsyncpa [#allocation4], 0
    %s14 = scalar_lea.sflag [#allocation4], 1
    %15 = vsyncpa %s14, 0
    loop: start=0, step=1, limit=4
    $region2: #{tpu_custom_call.1} parent=1 // loop_pre_header
      _
    $region3: #{tpu_custom_call.1} parent=1 // loop_header
      %s17 = sphi 0, %s21
      %p18 = scmp.ge.s32.totalorder %s17, 4
      %s24 = sphi 0, %s36
      %s25 = sphi 0, %s32
      %s26 = sphi 0, %s24
      %s27 = sphi 0, %s25
      %s28 = sphi 0, %s26
      %s29 = sphi 0, %s27
      %s41 = sphi 0, %s43
      %s44 = sphi 0, %s41
      %s45 = sphi 0, %s44
      %s61 = sphi 0, %s45
      %s69 = sphi 0, %s71
      %s72 = sphi 0, %s69
      %s73 = sphi 0, %s72
      %s89 = sphi 0, %s73
      %s93 = sphi 0, %s93
      %s95 = sphi 0, %s93
      %s96 = sphi 0, %s95
      %s110 = sphi 0, %s96
      %s114 = sphi 0, %s114
      %s116 = sphi 0, %s114
      %s117 = sphi 0, %s116
      %s131 = sphi 0, %s117
      %s135 = sphi 0, %s135
      %s137 = sphi 0, %s135
      %s138 = sphi 0, %s137
      %s152 = sphi 0, %s138
      %s160 = sphi 0, %s162
      %s163 = sphi 0, %s160
      %s164 = sphi 0, %s163
      %s180 = sphi 0, %s164
    $region4: #{tpu_custom_call.1} parent=1 // loop_header_branch
      %20 = sbr.rel (%p18) target = $region8
    $region5: #{tpu_custom_call.1} parent=1 // loop_body
      %s22 = ssub.s32 %s17, 1
      %s23 = ssub.s32 %s17, 2
      %s30 = sadd.s32 1, %s25
      %p31 = scmp.ge.s32.totalorder %s30, 1
      %s32 = scalar_select %p31, 0, %s30
      %s33 = sadd.s32 1, %s24
      %s34 = scalar_select %p31, %s33, %s24
      %p35 = scmp.ge.s32.totalorder %s34, 2
      %s36 = scalar_select %p35, 0, %s34
      %s37 = ssub.s32 %s24, %s36
      %s38 = ssub.s32 %s25, %s32
      %s39 = sor.u32 %s37, %s38
      %p40 = scmp.eq.s32.totalorder %s39, 0
      %s42 = sadd.s32 %s41, 1
      %s43 = scalar_select %p40, %s41, %s42
      %p46 = pneg %p40
      %p47 = scmp.eq.s32.totalorder %s17, 1
      %p48 = por %p46, %p47
      %p49 = scmp.ne.s32.totalorder %s41, %s44
      %p50 = scmp.eq.s32.totalorder %s17, 0
      %p51 = por %p49, %p50
      %p52 = scmp.ne.s32.totalorder %s41, %s44
      %p53 = scmp.eq.s32.totalorder %s22, 1
      %p54 = por %p52, %p53
      %p55 = scmp.ne.s32.totalorder %s44, %s45
      %p56 = scmp.eq.s32.totalorder %s22, 0
      %p57 = por %p55, %p56
      %p58 = scmp.ne.s32.totalorder %s44, %s45
      %p59 = scmp.eq.s32.totalorder %s23, 1
      %p60 = por %p58, %p59
      %p62 = scmp.ne.s32.totalorder %s45, %s61
      %p63 = scmp.eq.s32.totalorder %s23, 0
      %p64 = por %p62, %p63
      %s65 = ssub.s32 %s24, %s36
      %s66 = ssub.s32 %s25, %s32
      %s67 = sor.u32 %s65, %s66
      %p68 = scmp.eq.s32.totalorder %s67, 0
      %s70 = sadd.s32 %s69, 1
      %s71 = scalar_select %p68, %s69, %s70
      %p74 = pneg %p68
      %p75 = scmp.eq.s32.totalorder %s17, 1
      %p76 = por %p74, %p75
      %p77 = scmp.ne.s32.totalorder %s69, %s72
      %p78 = scmp.eq.s32.totalorder %s17, 0
      %p79 = por %p77, %p78
      %p80 = scmp.ne.s32.totalorder %s69, %s72
      %p81 = scmp.eq.s32.totalorder %s22, 1
      %p82 = por %p80, %p81
      %p83 = scmp.ne.s32.totalorder %s72, %s73
      %p84 = scmp.eq.s32.totalorder %s22, 0
      %p85 = por %p83, %p84
      %p86 = scmp.ne.s32.totalorder %s72, %s73
      %p87 = scmp.eq.s32.totalorder %s23, 1
      %p88 = por %p86, %p87
      %p90 = scmp.ne.s32.totalorder %s73, %s89
      %p91 = scmp.eq.s32.totalorder %s23, 0
      %p92 = por %p90, %p91
      %s94 = sadd.s32 %s93, 1
      %p97 = scmp.eq.s32.totalorder %s17, 1
      %p98 = scmp.ne.s32.totalorder %s93, %s95
      %p99 = scmp.eq.s32.totalorder %s17, 0
      %p100 = por %p98, %p99
      %p101 = scmp.ne.s32.totalorder %s93, %s95
      %p102 = scmp.eq.s32.totalorder %s22, 1
      %p103 = por %p101, %p102
      %p104 = scmp.ne.s32.totalorder %s95, %s96
      %p105 = scmp.eq.s32.totalorder %s22, 0
      %p106 = por %p104, %p105
      %p107 = scmp.ne.s32.totalorder %s95, %s96
      %p108 = scmp.eq.s32.totalorder %s23, 1
      %p109 = por %p107, %p108
      %p111 = scmp.ne.s32.totalorder %s96, %s110
      %p112 = scmp.eq.s32.totalorder %s23, 0
      %p113 = por %p111, %p112
      %s115 = sadd.s32 %s114, 1
      %p118 = scmp.eq.s32.totalorder %s17, 1
      %p119 = scmp.ne.s32.totalorder %s114, %s116
      %p120 = scmp.eq.s32.totalorder %s17, 0
      %p121 = por %p119, %p120
      %p122 = scmp.ne.s32.totalorder %s114, %s116
      %p123 = scmp.eq.s32.totalorder %s22, 1
      %p124 = por %p122, %p123
      %p125 = scmp.ne.s32.totalorder %s116, %s117
      %p126 = scmp.eq.s32.totalorder %s22, 0
      %p127 = por %p125, %p126
      %p128 = scmp.ne.s32.totalorder %s116, %s117
      %p129 = scmp.eq.s32.totalorder %s23, 1
      %p130 = por %p128, %p129
      %p132 = scmp.ne.s32.totalorder %s117, %s131
      %p133 = scmp.eq.s32.totalorder %s23, 0
      %p134 = por %p132, %p133
      %s136 = sadd.s32 %s135, 1
      %p139 = scmp.eq.s32.totalorder %s17, 1
      %p140 = scmp.ne.s32.totalorder %s135, %s137
      %p141 = scmp.eq.s32.totalorder %s17, 0
      %p142 = por %p140, %p141
      %p143 = scmp.ne.s32.totalorder %s135, %s137
      %p144 = scmp.eq.s32.totalorder %s22, 1
      %p145 = por %p143, %p144
      %p146 = scmp.ne.s32.totalorder %s137, %s138
      %p147 = scmp.eq.s32.totalorder %s22, 0
      %p148 = por %p146, %p147
      %p149 = scmp.ne.s32.totalorder %s137, %s138
      %p150 = scmp.eq.s32.totalorder %s23, 1
      %p151 = por %p149, %p150
      %p153 = scmp.ne.s32.totalorder %s138, %s152
      %p154 = scmp.eq.s32.totalorder %s23, 0
      %p155 = por %p153, %p154
      %s156 = ssub.s32 %s24, %s36
      %s157 = ssub.s32 %s25, %s32
      %s158 = sor.u32 %s156, %s157
      %p159 = scmp.eq.s32.totalorder %s158, 0
      %s161 = sadd.s32 %s160, 1
      %s162 = scalar_select %p159, %s160, %s161
      %p165 = pneg %p159
      %p166 = scmp.eq.s32.totalorder %s17, 1
      %p167 = por %p165, %p166
      %p168 = scmp.ne.s32.totalorder %s160, %s163
      %p169 = scmp.eq.s32.totalorder %s17, 0
      %p170 = por %p168, %p169
      %p171 = scmp.ne.s32.totalorder %s160, %s163
      %p172 = scmp.eq.s32.totalorder %s22, 1
      %p173 = por %p171, %p172
      %p174 = scmp.ne.s32.totalorder %s163, %s164
      %p175 = scmp.eq.s32.totalorder %s22, 0
      %p176 = por %p174, %p175
      %p177 = scmp.ne.s32.totalorder %s163, %s164
      %p178 = scmp.eq.s32.totalorder %s23, 1
      %p179 = por %p177, %p178
      %p181 = scmp.ne.s32.totalorder %s164, %s180
      %p182 = scmp.eq.s32.totalorder %s23, 0
      %p183 = por %p181, %p182
      %p184 = scmp.le.s32.totalorder 1, %s17
      %p185 = scmp.lt.s32.totalorder %s17, 3
      %p186 = pnand %p184, %p185
      %p187 = pneg %p186
      // Predicated region
      $region9: #{tpu_custom_call.1} parent=5 // pred_check
        _
      $region10: #{tpu_custom_call.1} parent=5 // pred_check_branch
        %189 = sbr.rel (%p186) target = $region12
      $region11: #{tpu_custom_call.1} parent=5 // pred_region
        %s190 = ssub.s32 %s17, 1
        // Predicated region
        $region13: #{tpu_custom_call.1} parent=11 // pred_check
          %p191 = pneg %p106
        $region14: #{tpu_custom_call.1} parent=11 // pred_check_branch
          %193 = sbr.rel (%p191) target = $region16
        $region15: #{tpu_custom_call.1} parent=11 // pred_region
          _
        $region16: #{tpu_custom_call.1} parent=11 // pred_fallthru
          _
        // Predicated region
        $region17: #{tpu_custom_call.1} parent=11 // pred_check
          %p194 = pneg %p127
        $region18: #{tpu_custom_call.1} parent=11 // pred_check_branch
          %196 = sbr.rel (%p194) target = $region20
        $region19: #{tpu_custom_call.1} parent=11 // pred_region
          _
        $region20: #{tpu_custom_call.1} parent=11 // pred_fallthru
          _
        // Predicated region
        $region21: #{tpu_custom_call.1} parent=11 // pred_check
          %p197 = pneg %p148
        $region22: #{tpu_custom_call.1} parent=11 // pred_check_branch
          %199 = sbr.rel (%p197) target = $region24
        $region23: #{tpu_custom_call.1} parent=11 // pred_region
          _
        $region24: #{tpu_custom_call.1} parent=11 // pred_fallthru
          _
      $region12: #{tpu_custom_call.1} parent=5 // pred_fallthru
        _
      %p200 = scmp.lt.s32.totalorder %s17, 2
      // Predicated region
      $region25: #{tpu_custom_call.1} parent=5 // pred_check
        %p201 = pneg %p200
      $region26: #{tpu_custom_call.1} parent=5 // pred_check_branch
        %203 = sbr.rel (%p201) target = $region28
      $region27: #{tpu_custom_call.1} parent=5 // pred_region
        // Predicated region
        $region29: #{tpu_custom_call.1} parent=27 // pred_check
          %p204 = pneg %p51
        $region30: #{tpu_custom_call.1} parent=27 // pred_check_branch
          %206 = sbr.rel (%p204) target = $region32
        $region31: #{tpu_custom_call.1} parent=27 // pred_region
          %s207 = sand.u32 %s41, 1
          %s208 = scalar_lea.sflag [#allocation3], %s207
          %s209 = sand.u32 %s41, 1
          %s210 = smul.addr %s209, 72
          %s211 = scalar_lea.vmem [#allocation2], %s210
          %s212 = smul.u32 2, %s25
          %s214 = ssub.s32 1152, 1152
          %215 = vsyncadd %s208, %s214
          %s216 = smul.addr %s24, 18
          %s217 = sadd.s32 %s212, %s216
          %s218 = smul.addr %s217, 64
          %s219 = scalar_lea.hbm %s0, %s218
          %s220 = sshll.u32 %s211, 4
          %s221 = int_to_ptr.vmem [resolvable:$true] %s220
          %226 = dma.hbm_to_vmem [thread:$0]  %s219, 1152, %s221, %s208, 128, 128, 8
        $region32: #{tpu_custom_call.1} parent=27 // pred_fallthru
          _
        // Predicated region
        $region33: #{tpu_custom_call.1} parent=27 // pred_check
          %p227 = pneg %p79
        $region34: #{tpu_custom_call.1} parent=27 // pred_check_branch
          %229 = sbr.rel (%p227) target = $region36
        $region35: #{tpu_custom_call.1} parent=27 // pred_region
          %s230 = smul.u32 2, %s25
          %p231 = scmp.lt.s32.totalorder %s24, 1
          %s232 = scalar_select %p231, %s24, 1
          %p233 = scmp.lt.s32.totalorder %s230, 1
          %s234 = scalar_select %p233, %s230, 1
          %s235 = smul.addr %s232, 2
          %s236 = sadd.s32 %s234, %s235
          %s237 = smul.addr %s236, 4
          %s238 = scalar_lea.vmem %s1, %s237
          %s239 = smul.u32 2, %s25
        $region36: #{tpu_custom_call.1} parent=27 // pred_fallthru
          _
      $region28: #{tpu_custom_call.1} parent=5 // pred_fallthru
        _
      %p240 = scmp.le.s32.totalorder 1, %s17
      %p241 = scmp.lt.s32.totalorder %s17, 3
      %p242 = pnand %p240, %p241
      %p243 = pneg %p242
      // Predicated region
      $region37: #{tpu_custom_call.1} parent=5 // pred_check
        _
      $region38: #{tpu_custom_call.1} parent=5 // pred_check_branch
        %245 = sbr.rel (%p242) target = $region40
      $region39: #{tpu_custom_call.1} parent=5 // pred_region
        %s246 = ssub.s32 %s17, 1
        %s247 = sand.u32 %s44, 1
        %s248 = scalar_lea.sflag [#allocation3], %s247
        %s249 = sand.u32 %s44, 1
        %s250 = smul.addr %s249, 72
        %s251 = scalar_lea.vmem [#allocation2], %s250
        // Predicated region
        $region41: #{tpu_custom_call.1} parent=39 // pred_check
          %p252 = pneg %p57
        $region42: #{tpu_custom_call.1} parent=39 // pred_check_branch
          %254 = sbr.rel (%p252) target = $region44
        $region43: #{tpu_custom_call.1} parent=39 // pred_region
          %255 = dma.done %s248, 1152
        $region44: #{tpu_custom_call.1} parent=39 // pred_fallthru
          _
        %s256 = sand.u32 %s44, 1
        %s257 = scalar_lea.sflag [#allocation3], %s256
        %s258 = sand.u32 %s44, 1
        %s259 = smul.addr %s258, 72
        %s260 = scalar_lea.vmem [#allocation2], %s259
        %p261 = pneg %p57
        %p262 = pneg %p54
        %s263 = smul.u32 2, %s27
        %p264 = scmp.lt.s32.totalorder %s26, 1
        %s265 = scalar_select %p264, %s26, 1
        %p266 = scmp.lt.s32.totalorder %s263, 1
        %s267 = scalar_select %p266, %s263, 1
        %s268 = smul.addr %s265, 2
        %s269 = sadd.s32 %s267, %s268
        %s270 = smul.addr %s269, 4
        %s271 = scalar_lea.vmem %s1, %s270
        %p272 = pneg %p85
        %p273 = pneg %p82
        %p274 = pneg %p106
        %p275 = pneg %p103
        %p276 = pneg %p127
        %p277 = pneg %p124
        %p278 = pneg %p148
        %p279 = pneg %p145
        %p280 = pneg %p176
        %p281 = pneg %p173
        %s282 = sand.u32 %s163, 1
        %s283 = scalar_lea.sflag [#allocation4], %s282
        %s284 = sand.u32 %s163, 1
        %s285 = smul.addr %s284, 64
        %s286 = scalar_lea.vmem [#allocation5], %s285
        %s287 = smul.u32 2, %s27
        %s288 = smul.u32 2, %s27
        %p289 = scmp.lt.s32.totalorder %s26, 1
        %s290 = scalar_select %p289, %s26, 1
        %p291 = scmp.lt.s32.totalorder %s288, 1
        %s292 = scalar_select %p291, %s288, 1
        %s293 = smul.addr %s290, 2
        %s294 = sadd.s32 %s292, %s293
        %s295 = smul.addr %s294, 4
        %s296 = scalar_lea.vmem %s1, %s295
        %s297 = smul.u32 2, %s27
        %s298 = smul.u32 2, %s27
        %v299 = vld [vmem:[%s296] sm:$0xff]
        %v300 = vld [vmem:[%s3] sm:$0xff]
        %v301 = vld [vmem:[%s3 + $0x8] sm:$0xff]
        %v302 = vld [vmem:[%s3 + $0x10] sm:$0xff]
        %v303 = vld [vmem:[%s3 + $0x18] sm:$0xff]
        %v304 = vld [vmem:[%s251] sm:$0xff]
        %v305 = vsub.f32 %v304, %v299
        %v307 = vcombine.high %v305, %v305
        %vm308 = vcmask 31744
        %v310 = vsel %vm308, %v300, 0
        %v313 = vsel %vm308, %v301, 0
        %v316 = vsel %vm308, %v302, 0
        %v319 = vsel %vm308, %v303, 0
        %vm321 = vcmask 1043456
        %v322 = vsel %vm321, %v305, 0
        %v324 = vsel %vm321, %v307, 0
        %326 = vmatprep.subr.mxu0 %v324
        %327 = vmatpush1.msra.mxu0 %v322
        %328 = vmatprep.subr.mxu0 0.0
        %329 = vmatpush1.msra.mxu0 0.0
        %330 = vmatprep.subr.mxu0 0.0
        %331 = vmatpush1.msra.mxu0 0.0
        %332 = vmatprep.subr.mxu0 0.0
        %333 = vmatpush1.msra.mxu0 0.0
        %334 = vmatprep.subr.mxu0 0.0
        %335 = vmatpush1.msra.mxu0 0.0
        %336 = vmatprep.subr.mxu0 0.0
        %337 = vmatpush1.msra.mxu0 0.0
        %338 = vmatprep.subr.mxu0 0.0
        %339 = vmatpush1.msra.mxu0 0.0
        %340 = vmatprep.subr.mxu0 0.0
        %341 = vmatpush1.msra.mxu0 0.0
        %342 = vmatprep.subr.mxu0 0.0
        %343 = vmatpush1.msra.mxu0 0.0
        %344 = vmatprep.subr.mxu0 0.0
        %345 = vmatpush1.msra.mxu0 0.0
        %346 = vmatprep.subr.mxu0 0.0
        %347 = vmatpush1.msra.mxu0 0.0
        %348 = vmatprep.subr.mxu0 0.0
        %349 = vmatpush1.msra.mxu0 0.0
        %350 = vmatprep.subr.mxu0 0.0
        %351 = vmatpush1.msra.mxu0 0.0
        %352 = vmatprep.subr.mxu0 0.0
        %353 = vmatpush1.msra.mxu0 0.0
        %354 = vmatprep.subr.mxu0 0.0
        %355 = vmatpush1.msra.mxu0 0.0
        %356 = vmatprep.subr.mxu0 0.0
        %357 = vmatpush1.msra.mxu0 0.0
        %358 = vmatprep.subr.mxu0 0.0
        %359 = vmatpush1.msra.mxu0 0.0
        %360 = vmatprep.subr.mxu0 0.0
        %361 = vmatpush1.msra.mxu0 0.0
        %362 = vmatprep.subr.mxu0 0.0
        %363 = vmatpush1.msra.mxu0 0.0
        %364 = vmatprep.subr.mxu0 0.0
        %365 = vmatpush1.msra.mxu0 0.0
        %366 = vmatprep.subr.mxu0 0.0
        %367 = vmatpush1.msra.mxu0 0.0
        %368 = vmatprep.subr.mxu0 0.0
        %369 = vmatpush1.msra.mxu0 0.0
        %370 = vmatprep.subr.mxu0 0.0
        %371 = vmatpush1.msra.mxu0 0.0
        %372 = vmatprep.subr.mxu0 0.0
        %373 = vmatpush1.msra.mxu0 0.0
        %374 = vmatprep.subr.mxu0 0.0
        %375 = vmatpush1.msra.mxu0 0.0
        %376 = vmatprep.subr.mxu0 0.0
        %377 = vmatpush1.msra.mxu0 0.0
        %378 = vmatprep.subr.mxu0 0.0
        %379 = vmatpush1.msra.mxu0 0.0
        %380 = vmatprep.subr.mxu0 0.0
        %381 = vmatpush1.msra.mxu0 0.0
        %382 = vmatprep.subr.mxu0 0.0
        %383 = vmatpush1.msra.mxu0 0.0
        %384 = vmatprep.subr.mxu0 0.0
        %385 = vmatpush1.msra.mxu0 0.0
        %386 = vmatprep.subr.mxu0 0.0
        %387 = vmatpush1.msra.mxu0 0.0
        %388 = vmatprep.subr.mxu0 0.0
        %389 = vmatpush1.msra.mxu0 0.0
        %390 = vmatprep.mubr.f32.mxu0 0.0
        %391 = vmatmul.mubr.f32.gmra.mrb[0].mxu0 %v310
        %v392 = vpop.f32.mrb[0].mxu0
        %v393 = vadd.f32 0.0, %v392
        %v394 = vpop.f32.mrb[0].mxu0
        %v395 = vadd.f32 0.0, %v394
        %396 = vmatprep.mubr.f32.mxu0 0.0
        %397 = vmatmul.mubr.f32.gmra.mrb[0].mxu0 %v313
        %v398 = vpop.f32.mrb[0].mxu0
        %v399 = vadd.f32 0.0, %v398
        %v400 = vpop.f32.mrb[0].mxu0
        %v401 = vadd.f32 0.0, %v400
        %402 = vmatprep.mubr.f32.mxu0 0.0
        %403 = vmatmul.mubr.f32.gmra.mrb[0].mxu0 %v316
        %v404 = vpop.f32.mrb[0].mxu0
        %v405 = vadd.f32 0.0, %v404
        %v406 = vpop.f32.mrb[0].mxu0
        %v407 = vadd.f32 0.0, %v406
        %408 = vmatprep.mubr.f32.mxu0 0.0
        %409 = vmatmul.mubr.f32.gmra.mrb[0].mxu0 %v319
        %v410 = vpop.f32.mrb[0].mxu0
        %v411 = vadd.f32 0.0, %v410
        %v412 = vpop.f32.mrb[0].mxu0
        %v413 = vadd.f32 0.0, %v412
        %414 = vdwg.mxu0
        %s415 = scalar_lea.vmem %s251, 8 [#allocation2]
        %v416 = vld [vmem:[%s415] sm:$0xff]
        %v417 = vsub.f32 %v416, %v299
        %v419 = vcombine.high %v417, %v417
        %v420 = vsel %vm321, %v417, 0
        %v422 = vsel %vm321, %v419, 0
        %424 = vmatprep.subr.mxu0 %v422
        %425 = vmatpush1.msra.mxu0 %v420
        %426 = vmatprep.subr.mxu0 0.0
        %427 = vmatpush1.msra.mxu0 0.0
        %428 = vmatprep.subr.mxu0 0.0
        %429 = vmatpush1.msra.mxu0 0.0
        %430 = vmatprep.subr.mxu0 0.0
        %431 = vmatpush1.msra.mxu0 0.0
        %432 = vmatprep.subr.mxu0 0.0
        %433 = vmatpush1.msra.mxu0 0.0
        %434 = vmatprep.subr.mxu0 0.0
        %435 = vmatpush1.msra.mxu0 0.0
        %436 = vmatprep.subr.mxu0 0.0
        %437 = vmatpush1.msra.mxu0 0.0
        %438 = vmatprep.subr.mxu0 0.0
        %439 = vmatpush1.msra.mxu0 0.0
        %440 = vmatprep.subr.mxu0 0.0
        %441 = vmatpush1.msra.mxu0 0.0
        %442 = vmatprep.subr.mxu0 0.0
        %443 = vmatpush1.msra.mxu0 0.0
        %444 = vmatprep.subr.mxu0 0.0
        %445 = vmatpush1.msra.mxu0 0.0
        %446 = vmatprep.subr.mxu0 0.0
        %447 = vmatpush1.msra.mxu0 0.0
        %448 = vmatprep.subr.mxu0 0.0
        %449 = vmatpush1.msra.mxu0 0.0
        %450 = vmatprep.subr.mxu0 0.0
        %451 = vmatpush1.msra.mxu0 0.0
        %452 = vmatprep.subr.mxu0 0.0
        %453 = vmatpush1.msra.mxu0 0.0
        %454 = vmatprep.subr.mxu0 0.0
        %455 = vmatpush1.msra.mxu0 0.0
        %456 = vmatprep.subr.mxu0 0.0
        %457 = vmatpush1.msra.mxu0 0.0
        %458 = vmatprep.subr.mxu0 0.0
        %459 = vmatpush1.msra.mxu0 0.0
        %460 = vmatprep.subr.mxu0 0.0
        %461 = vmatpush1.msra.mxu0 0.0
        %462 = vmatprep.subr.mxu0 0.0
        %463 = vmatpush1.msra.mxu0 0.0
        %464 = vmatprep.subr.mxu0 0.0
        %465 = vmatpush1.msra.mxu0 0.0
        %466 = vmatprep.subr.mxu0 0.0
        %467 = vmatpush1.msra.mxu0 0.0
        %468 = vmatprep.subr.mxu0 0.0
        %469 = vmatpush1.msra.mxu0 0.0
        %470 = vmatprep.subr.mxu0 0.0
        %471 = vmatpush1.msra.mxu0 0.0
        %472 = vmatprep.subr.mxu0 0.0
        %473 = vmatpush1.msra.mxu0 0.0
        %474 = vmatprep.subr.mxu0 0.0
        %475 = vmatpush1.msra.mxu0 0.0
        %476 = vmatprep.subr.mxu0 0.0
        %477 = vmatpush1.msra.mxu0 0.0
        %478 = vmatprep.subr.mxu0 0.0
        %479 = vmatpush1.msra.mxu0 0.0
        %480 = vmatprep.subr.mxu0 0.0
        %481 = vmatpush1.msra.mxu0 0.0
        %482 = vmatprep.subr.mxu0 0.0
        %483 = vmatpush1.msra.mxu0 0.0
        %484 = vmatprep.subr.mxu0 0.0
        %485 = vmatpush1.msra.mxu0 0.0
        %486 = vmatprep.subr.mxu0 0.0
        %487 = vmatpush1.msra.mxu0 0.0
        %488 = vmatprep.mubr.f32.mxu0 0.0
        %489 = vmatmul.mubr.f32.gmra.mrb[0].mxu0 %v310
        %v490 = vpop.f32.mrb[0].mxu0
        %v491 = vadd.f32 0.0, %v490
        %v492 = vpop.f32.mrb[0].mxu0
        %v493 = vadd.f32 0.0, %v492
        %494 = vmatprep.mubr.f32.mxu0 0.0
        %495 = vmatmul.mubr.f32.gmra.mrb[0].mxu0 %v313
        %v496 = vpop.f32.mrb[0].mxu0
        %v497 = vadd.f32 0.0, %v496
        %v498 = vpop.f32.mrb[0].mxu0
        %v499 = vadd.f32 0.0, %v498
        %500 = vmatprep.mubr.f32.mxu0 0.0
        %501 = vmatmul.mubr.f32.gmra.mrb[0].mxu0 %v316
        %v502 = vpop.f32.mrb[0].mxu0
        %v503 = vadd.f32 0.0, %v502
        %v504 = vpop.f32.mrb[0].mxu0
        %v505 = vadd.f32 0.0, %v504
        %506 = vmatprep.mubr.f32.mxu0 0.0
        %507 = vmatmul.mubr.f32.gmra.mrb[0].mxu0 %v319
        %v508 = vpop.f32.mrb[0].mxu0
        %v509 = vadd.f32 0.0, %v508
        %v510 = vpop.f32.mrb[0].mxu0
        %v511 = vadd.f32 0.0, %v510
        %512 = vdwg.mxu0
        %v513 = vmax.f32 %v393, %v491
        %v514 = vmax.f32 %v395, %v493
        %v515 = vmax.f32 %v399, %v497
        %v516 = vmax.f32 %v401, %v499
        %v517 = vmax.f32 %v405, %v503
        %v518 = vmax.f32 %v407, %v505
        %v519 = vmax.f32 %v411, %v509
        %v520 = vmax.f32 %v413, %v511
        %s521 = scalar_lea.vmem %s251, 16 [#allocation2]
        %v522 = vld [vmem:[%s521] sm:$0xff]
        %v523 = vsub.f32 %v522, %v299
        %v525 = vcombine.high %v523, %v523
        %v526 = vsel %vm321, %v523, 0
        %v528 = vsel %vm321, %v525, 0
        %530 = vmatprep.subr.mxu0 %v528
        %531 = vmatpush1.msra.mxu0 %v526
        %532 = vmatprep.subr.mxu0 0.0
        %533 = vmatpush1.msra.mxu0 0.0
        %534 = vmatprep.subr.mxu0 0.0
        %535 = vmatpush1.msra.mxu0 0.0
        %536 = vmatprep.subr.mxu0 0.0
        %537 = vmatpush1.msra.mxu0 0.0
        %538 = vmatprep.subr.mxu0 0.0
        %539 = vmatpush1.msra.mxu0 0.0
        %540 = vmatprep.subr.mxu0 0.0
        %541 = vmatpush1.msra.mxu0 0.0
        %542 = vmatprep.subr.mxu0 0.0
        %543 = vmatpush1.msra.mxu0 0.0
        %544 = vmatprep.subr.mxu0 0.0
        %545 = vmatpush1.msra.mxu0 0.0
        %546 = vmatprep.subr.mxu0 0.0
        %547 = vmatpush1.msra.mxu0 0.0
        %548 = vmatprep.subr.mxu0 0.0
        %549 = vmatpush1.msra.mxu0 0.0
        %550 = vmatprep.subr.mxu0 0.0
        %551 = vmatpush1.msra.mxu0 0.0
        %552 = vmatprep.subr.mxu0 0.0
        %553 = vmatpush1.msra.mxu0 0.0
        %554 = vmatprep.subr.mxu0 0.0
        %555 = vmatpush1.msra.mxu0 0.0
        %556 = vmatprep.subr.mxu0 0.0
        %557 = vmatpush1.msra.mxu0 0.0
        %558 = vmatprep.subr.mxu0 0.0
        %559 = vmatpush1.msra.mxu0 0.0
        %560 = vmatprep.subr.mxu0 0.0
        %561 = vmatpush1.msra.mxu0 0.0
        %562 = vmatprep.subr.mxu0 0.0
        %563 = vmatpush1.msra.mxu0 0.0
        %564 = vmatprep.subr.mxu0 0.0
        %565 = vmatpush1.msra.mxu0 0.0
        %566 = vmatprep.subr.mxu0 0.0
        %567 = vmatpush1.msra.mxu0 0.0
        %568 = vmatprep.subr.mxu0 0.0
        %569 = vmatpush1.msra.mxu0 0.0
        %570 = vmatprep.subr.mxu0 0.0
        %571 = vmatpush1.msra.mxu0 0.0
        %572 = vmatprep.subr.mxu0 0.0
        %573 = vmatpush1.msra.mxu0 0.0
        %574 = vmatprep.subr.mxu0 0.0
        %575 = vmatpush1.msra.mxu0 0.0
        %576 = vmatprep.subr.mxu0 0.0
        %577 = vmatpush1.msra.mxu0 0.0
        %578 = vmatprep.subr.mxu0 0.0
        %579 = vmatpush1.msra.mxu0 0.0
        %580 = vmatprep.subr.mxu0 0.0
        %581 = vmatpush1.msra.mxu0 0.0
        %582 = vmatprep.subr.mxu0 0.0
        %583 = vmatpush1.msra.mxu0 0.0
        %584 = vmatprep.subr.mxu0 0.0
        %585 = vmatpush1.msra.mxu0 0.0
        %586 = vmatprep.subr.mxu0 0.0
        %587 = vmatpush1.msra.mxu0 0.0
        %588 = vmatprep.subr.mxu0 0.0
        %589 = vmatpush1.msra.mxu0 0.0
        %590 = vmatprep.subr.mxu0 0.0
        %591 = vmatpush1.msra.mxu0 0.0
        %592 = vmatprep.subr.mxu0 0.0
        %593 = vmatpush1.msra.mxu0 0.0
        %594 = vmatprep.mubr.f32.mxu0 0.0
        %595 = vmatmul.mubr.f32.gmra.mrb[0].mxu0 %v310
        %v596 = vpop.f32.mrb[0].mxu0
        %v597 = vadd.f32 0.0, %v596
        %v598 = vpop.f32.mrb[0].mxu0
        %v599 = vadd.f32 0.0, %v598
        %600 = vmatprep.mubr.f32.mxu0 0.0
        %601 = vmatmul.mubr.f32.gmra.mrb[0].mxu0 %v313
        %v602 = vpop.f32.mrb[0].mxu0
        %v603 = vadd.f32 0.0, %v602
        %v604 = vpop.f32.mrb[0].mxu0
        %v605 = vadd.f32 0.0, %v604
        %606 = vmatprep.mubr.f32.mxu0 0.0
        %607 = vmatmul.mubr.f32.gmra.mrb[0].mxu0 %v316
        %v608 = vpop.f32.mrb[0].mxu0
        %v609 = vadd.f32 0.0, %v608
        %v610 = vpop.f32.mrb[0].mxu0
        %v611 = vadd.f32 0.0, %v610
        %612 = vmatprep.mubr.f32.mxu0 0.0
        %613 = vmatmul.mubr.f32.gmra.mrb[0].mxu0 %v319
        %v614 = vpop.f32.mrb[0].mxu0
        %v615 = vadd.f32 0.0, %v614
        %v616 = vpop.f32.mrb[0].mxu0
        %v617 = vadd.f32 0.0, %v616
        %618 = vdwg.mxu0
        %v619 = vmax.f32 %v513, %v597
        %v620 = vmax.f32 %v514, %v599
        %v621 = vmax.f32 %v515, %v603
        %v622 = vmax.f32 %v516, %v605
        %v623 = vmax.f32 %v517, %v609
        %v624 = vmax.f32 %v518, %v611
        %v625 = vmax.f32 %v519, %v615
        %v626 = vmax.f32 %v520, %v617
        %s627 = scalar_lea.vmem %s251, 24 [#allocation2]
        %v628 = vld [vmem:[%s627] sm:$0xff]
        %v629 = vsub.f32 %v628, %v299
        %v631 = vcombine.high %v629, %v629
        %v632 = vsel %vm321, %v629, 0
        %v634 = vsel %vm321, %v631, 0
        %636 = vmatprep.subr.mxu0 %v634
        %637 = vmatpush1.msra.mxu0 %v632
        %638 = vmatprep.subr.mxu0 0.0
        %639 = vmatpush1.msra.mxu0 0.0
        %640 = vmatprep.subr.mxu0 0.0
        %641 = vmatpush1.msra.mxu0 0.0
        %642 = vmatprep.subr.mxu0 0.0
        %643 = vmatpush1.msra.mxu0 0.0
        %644 = vmatprep.subr.mxu0 0.0
        %645 = vmatpush1.msra.mxu0 0.0
        %646 = vmatprep.subr.mxu0 0.0
        %647 = vmatpush1.msra.mxu0 0.0
        %648 = vmatprep.subr.mxu0 0.0
        %649 = vmatpush1.msra.mxu0 0.0
        %650 = vmatprep.subr.mxu0 0.0
        %651 = vmatpush1.msra.mxu0 0.0
        %652 = vmatprep.subr.mxu0 0.0
        %653 = vmatpush1.msra.mxu0 0.0
        %654 = vmatprep.subr.mxu0 0.0
        %655 = vmatpush1.msra.mxu0 0.0
        %656 = vmatprep.subr.mxu0 0.0
        %657 = vmatpush1.msra.mxu0 0.0
        %658 = vmatprep.subr.mxu0 0.0
        %659 = vmatpush1.msra.mxu0 0.0
        %660 = vmatprep.subr.mxu0 0.0
        %661 = vmatpush1.msra.mxu0 0.0
        %662 = vmatprep.subr.mxu0 0.0
        %663 = vmatpush1.msra.mxu0 0.0
        %664 = vmatprep.subr.mxu0 0.0
        %665 = vmatpush1.msra.mxu0 0.0
        %666 = vmatprep.subr.mxu0 0.0
        %667 = vmatpush1.msra.mxu0 0.0
        %668 = vmatprep.subr.mxu0 0.0
        %669 = vmatpush1.msra.mxu0 0.0
        %670 = vmatprep.subr.mxu0 0.0
        %671 = vmatpush1.msra.mxu0 0.0
        %672 = vmatprep.subr.mxu0 0.0
        %673 = vmatpush1.msra.mxu0 0.0
        %674 = vmatprep.subr.mxu0 0.0
        %675 = vmatpush1.msra.mxu0 0.0
        %676 = vmatprep.subr.mxu0 0.0
        %677 = vmatpush1.msra.mxu0 0.0
        %678 = vmatprep.subr.mxu0 0.0
        %679 = vmatpush1.msra.mxu0 0.0
        %680 = vmatprep.subr.mxu0 0.0
        %681 = vmatpush1.msra.mxu0 0.0
        %682 = vmatprep.subr.mxu0 0.0
        %683 = vmatpush1.msra.mxu0 0.0
        %684 = vmatprep.subr.mxu0 0.0
        %685 = vmatpush1.msra.mxu0 0.0
        %686 = vmatprep.subr.mxu0 0.0
        %687 = vmatpush1.msra.mxu0 0.0
        %688 = vmatprep.subr.mxu0 0.0
        %689 = vmatpush1.msra.mxu0 0.0
        %690 = vmatprep.subr.mxu0 0.0
        %691 = vmatpush1.msra.mxu0 0.0
        %692 = vmatprep.subr.mxu0 0.0
        %693 = vmatpush1.msra.mxu0 0.0
        %694 = vmatprep.subr.mxu0 0.0
        %695 = vmatpush1.msra.mxu0 0.0
        %696 = vmatprep.subr.mxu0 0.0
        %697 = vmatpush1.msra.mxu0 0.0
        %698 = vmatprep.subr.mxu0 0.0
        %699 = vmatpush1.msra.mxu0 0.0
        %700 = vmatprep.mubr.f32.mxu0 0.0
        %701 = vmatmul.mubr.f32.gmra.mrb[0].mxu0 %v310
        %v702 = vpop.f32.mrb[0].mxu0
        %v703 = vadd.f32 0.0, %v702
        %v704 = vpop.f32.mrb[0].mxu0
        %v705 = vadd.f32 0.0, %v704
        %706 = vmatprep.mubr.f32.mxu0 0.0
        %707 = vmatmul.mubr.f32.gmra.mrb[0].mxu0 %v313
        %v708 = vpop.f32.mrb[0].mxu0
        %v709 = vadd.f32 0.0, %v708
        %v710 = vpop.f32.mrb[0].mxu0
        %v711 = vadd.f32 0.0, %v710
        %712 = vmatprep.mubr.f32.mxu0 0.0
        %713 = vmatmul.mubr.f32.gmra.mrb[0].mxu0 %v316
        %v714 = vpop.f32.mrb[0].mxu0
        %v715 = vadd.f32 0.0, %v714
        %v716 = vpop.f32.mrb[0].mxu0
        %v717 = vadd.f32 0.0, %v716
        %718 = vmatprep.mubr.f32.mxu0 0.0
        %719 = vmatmul.mubr.f32.gmra.mrb[0].mxu0 %v319
        %v720 = vpop.f32.mrb[0].mxu0
        %v721 = vadd.f32 0.0, %v720
        %v722 = vpop.f32.mrb[0].mxu0
        %v723 = vadd.f32 0.0, %v722
        %724 = vdwg.mxu0
        %v725 = vmax.f32 %v619, %v703
        %v726 = vmax.f32 %v620, %v705
        %v727 = vmax.f32 %v621, %v709
        %v728 = vmax.f32 %v622, %v711
        %v729 = vmax.f32 %v623, %v715
        %v730 = vmax.f32 %v624, %v717
        %v731 = vmax.f32 %v625, %v721
        %v732 = vmax.f32 %v626, %v723
        %s733 = scalar_lea.vmem %s251, 32 [#allocation2]
        %v734 = vld [vmem:[%s733] sm:$0xff]
        %v735 = vsub.f32 %v734, %v299
        %v737 = vcombine.high %v735, %v735
        %v738 = vsel %vm321, %v735, 0
        %v740 = vsel %vm321, %v737, 0
        %742 = vmatprep.subr.mxu0 %v740
        %743 = vmatpush1.msra.mxu0 %v738
        %744 = vmatprep.subr.mxu0 0.0
        %745 = vmatpush1.msra.mxu0 0.0
        %746 = vmatprep.subr.mxu0 0.0
        %747 = vmatpush1.msra.mxu0 0.0
        %748 = vmatprep.subr.mxu0 0.0
        %749 = vmatpush1.msra.mxu0 0.0
        %750 = vmatprep.subr.mxu0 0.0
        %751 = vmatpush1.msra.mxu0 0.0
        %752 = vmatprep.subr.mxu0 0.0
        %753 = vmatpush1.msra.mxu0 0.0
        %754 = vmatprep.subr.mxu0 0.0
        %755 = vmatpush1.msra.mxu0 0.0
        %756 = vmatprep.subr.mxu0 0.0
        %757 = vmatpush1.msra.mxu0 0.0
        %758 = vmatprep.subr.mxu0 0.0
        %759 = vmatpush1.msra.mxu0 0.0
        %760 = vmatprep.subr.mxu0 0.0
        %761 = vmatpush1.msra.mxu0 0.0
        %762 = vmatprep.subr.mxu0 0.0
        %763 = vmatpush1.msra.mxu0 0.0
        %764 = vmatprep.subr.mxu0 0.0
        %765 = vmatpush1.msra.mxu0 0.0
        %766 = vmatprep.subr.mxu0 0.0
        %767 = vmatpush1.msra.mxu0 0.0
        %768 = vmatprep.subr.mxu0 0.0
        %769 = vmatpush1.msra.mxu0 0.0
        %770 = vmatprep.subr.mxu0 0.0
        %771 = vmatpush1.msra.mxu0 0.0
        %772 = vmatprep.subr.mxu0 0.0
        %773 = vmatpush1.msra.mxu0 0.0
        %774 = vmatprep.subr.mxu0 0.0
        %775 = vmatpush1.msra.mxu0 0.0
        %776 = vmatprep.subr.mxu0 0.0
        %777 = vmatpush1.msra.mxu0 0.0
        %778 = vmatprep.subr.mxu0 0.0
        %779 = vmatpush1.msra.mxu0 0.0
        %780 = vmatprep.subr.mxu0 0.0
        %781 = vmatpush1.msra.mxu0 0.0
        %782 = vmatprep.subr.mxu0 0.0
        %783 = vmatpush1.msra.mxu0 0.0
        %784 = vmatprep.subr.mxu0 0.0
        %785 = vmatpush1.msra.mxu0 0.0
        %786 = vmatprep.subr.mxu0 0.0
        %787 = vmatpush1.msra.mxu0 0.0
        %788 = vmatprep.subr.mxu0 0.0
        %789 = vmatpush1.msra.mxu0 0.0
        %790 = vmatprep.subr.mxu0 0.0
        %791 = vmatpush1.msra.mxu0 0.0
        %792 = vmatprep.subr.mxu0 0.0
        %793 = vmatpush1.msra.mxu0 0.0
        %794 = vmatprep.subr.mxu0 0.0
        %795 = vmatpush1.msra.mxu0 0.0
        %796 = vmatprep.subr.mxu0 0.0
        %797 = vmatpush1.msra.mxu0 0.0
        %798 = vmatprep.subr.mxu0 0.0
        %799 = vmatpush1.msra.mxu0 0.0
        %800 = vmatprep.subr.mxu0 0.0
        %801 = vmatpush1.msra.mxu0 0.0
        %802 = vmatprep.subr.mxu0 0.0
        %803 = vmatpush1.msra.mxu0 0.0
        %804 = vmatprep.subr.mxu0 0.0
        %805 = vmatpush1.msra.mxu0 0.0
        %806 = vmatprep.mubr.f32.mxu0 0.0
        %807 = vmatmul.mubr.f32.gmra.mrb[0].mxu0 %v310
        %v808 = vpop.f32.mrb[0].mxu0
        %v809 = vadd.f32 0.0, %v808
        %v810 = vpop.f32.mrb[0].mxu0
        %v811 = vadd.f32 0.0, %v810
        %812 = vmatprep.mubr.f32.mxu0 0.0
        %813 = vmatmul.mubr.f32.gmra.mrb[0].mxu0 %v313
        %v814 = vpop.f32.mrb[0].mxu0
        %v815 = vadd.f32 0.0, %v814
        %v816 = vpop.f32.mrb[0].mxu0
        %v817 = vadd.f32 0.0, %v816
        %818 = vmatprep.mubr.f32.mxu0 0.0
        %819 = vmatmul.mubr.f32.gmra.mrb[0].mxu0 %v316
        %v820 = vpop.f32.mrb[0].mxu0
        %v821 = vadd.f32 0.0, %v820
        %v822 = vpop.f32.mrb[0].mxu0
        %v823 = vadd.f32 0.0, %v822
        %824 = vmatprep.mubr.f32.mxu0 0.0
        %825 = vmatmul.mubr.f32.gmra.mrb[0].mxu0 %v319
        %v826 = vpop.f32.mrb[0].mxu0
        %v827 = vadd.f32 0.0, %v826
        %v828 = vpop.f32.mrb[0].mxu0
        %v829 = vadd.f32 0.0, %v828
        %830 = vdwg.mxu0
        %v831 = vmax.f32 %v725, %v809
        %v832 = vmax.f32 %v726, %v811
        %v833 = vmax.f32 %v727, %v815
        %v834 = vmax.f32 %v728, %v817
        %v835 = vmax.f32 %v729, %v821
        %v836 = vmax.f32 %v730, %v823
        %v837 = vmax.f32 %v731, %v827
        %v838 = vmax.f32 %v732, %v829
        %s839 = scalar_lea.vmem %s251, 40 [#allocation2]
        %v840 = vld [vmem:[%s839] sm:$0xff]
        %v841 = vsub.f32 %v840, %v299
        %v843 = vcombine.high %v841, %v841
        %v844 = vsel %vm321, %v841, 0
        %v846 = vsel %vm321, %v843, 0
        %848 = vmatprep.subr.mxu0 %v846
        %849 = vmatpush1.msra.mxu0 %v844
        %850 = vmatprep.subr.mxu0 0.0
        %851 = vmatpush1.msra.mxu0 0.0
        %852 = vmatprep.subr.mxu0 0.0
        %853 = vmatpush1.msra.mxu0 0.0
        %854 = vmatprep.subr.mxu0 0.0
        %855 = vmatpush1.msra.mxu0 0.0
        %856 = vmatprep.subr.mxu0 0.0
        %857 = vmatpush1.msra.mxu0 0.0
        %858 = vmatprep.subr.mxu0 0.0
        %859 = vmatpush1.msra.mxu0 0.0
        %860 = vmatprep.subr.mxu0 0.0
        %861 = vmatpush1.msra.mxu0 0.0
        %862 = vmatprep.subr.mxu0 0.0
        %863 = vmatpush1.msra.mxu0 0.0
        %864 = vmatprep.subr.mxu0 0.0
        %865 = vmatpush1.msra.mxu0 0.0
        %866 = vmatprep.subr.mxu0 0.0
        %867 = vmatpush1.msra.mxu0 0.0
        %868 = vmatprep.subr.mxu0 0.0
        %869 = vmatpush1.msra.mxu0 0.0
        %870 = vmatprep.subr.mxu0 0.0
        %871 = vmatpush1.msra.mxu0 0.0
        %872 = vmatprep.subr.mxu0 0.0
        %873 = vmatpush1.msra.mxu0 0.0
        %874 = vmatprep.subr.mxu0 0.0
        %875 = vmatpush1.msra.mxu0 0.0
        %876 = vmatprep.subr.mxu0 0.0
        %877 = vmatpush1.msra.mxu0 0.0
        %878 = vmatprep.subr.mxu0 0.0
        %879 = vmatpush1.msra.mxu0 0.0
        %880 = vmatprep.subr.mxu0 0.0
        %881 = vmatpush1.msra.mxu0 0.0
        %882 = vmatprep.subr.mxu0 0.0
        %883 = vmatpush1.msra.mxu0 0.0
        %884 = vmatprep.subr.mxu0 0.0
        %885 = vmatpush1.msra.mxu0 0.0
        %886 = vmatprep.subr.mxu0 0.0
        %887 = vmatpush1.msra.mxu0 0.0
        %888 = vmatprep.subr.mxu0 0.0
        %889 = vmatpush1.msra.mxu0 0.0
        %890 = vmatprep.subr.mxu0 0.0
        %891 = vmatpush1.msra.mxu0 0.0
        %892 = vmatprep.subr.mxu0 0.0
        %893 = vmatpush1.msra.mxu0 0.0
        %894 = vmatprep.subr.mxu0 0.0
        %895 = vmatpush1.msra.mxu0 0.0
        %896 = vmatprep.subr.mxu0 0.0
        %897 = vmatpush1.msra.mxu0 0.0
        %898 = vmatprep.subr.mxu0 0.0
        %899 = vmatpush1.msra.mxu0 0.0
        %900 = vmatprep.subr.mxu0 0.0
        %901 = vmatpush1.msra.mxu0 0.0
        %902 = vmatprep.subr.mxu0 0.0
        %903 = vmatpush1.msra.mxu0 0.0
        %904 = vmatprep.subr.mxu0 0.0
        %905 = vmatpush1.msra.mxu0 0.0
        %906 = vmatprep.subr.mxu0 0.0
        %907 = vmatpush1.msra.mxu0 0.0
        %908 = vmatprep.subr.mxu0 0.0
        %909 = vmatpush1.msra.mxu0 0.0
        %910 = vmatprep.subr.mxu0 0.0
        %911 = vmatpush1.msra.mxu0 0.0
        %912 = vmatprep.mubr.f32.mxu0 0.0
        %913 = vmatmul.mubr.f32.gmra.mrb[0].mxu0 %v310
        %v914 = vpop.f32.mrb[0].mxu0
        %v915 = vadd.f32 0.0, %v914
        %v916 = vpop.f32.mrb[0].mxu0
        %v917 = vadd.f32 0.0, %v916
        %918 = vmatprep.mubr.f32.mxu0 0.0
        %919 = vmatmul.mubr.f32.gmra.mrb[0].mxu0 %v313
        %v920 = vpop.f32.mrb[0].mxu0
        %v921 = vadd.f32 0.0, %v920
        %v922 = vpop.f32.mrb[0].mxu0
        %v923 = vadd.f32 0.0, %v922
        %924 = vmatprep.mubr.f32.mxu0 0.0
        %925 = vmatmul.mubr.f32.gmra.mrb[0].mxu0 %v316
        %v926 = vpop.f32.mrb[0].mxu0
        %v927 = vadd.f32 0.0, %v926
        %v928 = vpop.f32.mrb[0].mxu0
        %v929 = vadd.f32 0.0, %v928
        %930 = vmatprep.mubr.f32.mxu0 0.0
        %931 = vmatmul.mubr.f32.gmra.mrb[0].mxu0 %v319
        %v932 = vpop.f32.mrb[0].mxu0
        %v933 = vadd.f32 0.0, %v932
        %v934 = vpop.f32.mrb[0].mxu0
        %v935 = vadd.f32 0.0, %v934
        %936 = vdwg.mxu0
        %v937 = vmax.f32 %v831, %v915
        %v938 = vmax.f32 %v832, %v917
        %v939 = vmax.f32 %v833, %v921
        %v940 = vmax.f32 %v834, %v923
        %v941 = vmax.f32 %v835, %v927
        %v942 = vmax.f32 %v836, %v929
        %v943 = vmax.f32 %v837, %v933
        %v944 = vmax.f32 %v838, %v935
        %s945 = scalar_lea.vmem %s251, 48 [#allocation2]
        %v946 = vld [vmem:[%s945] sm:$0xff]
        %v947 = vsub.f32 %v946, %v299
        %v949 = vcombine.high %v947, %v947
        %v950 = vsel %vm321, %v947, 0
        %v952 = vsel %vm321, %v949, 0
        %954 = vmatprep.subr.mxu0 %v952
        %955 = vmatpush1.msra.mxu0 %v950
        %956 = vmatprep.subr.mxu0 0.0
        %957 = vmatpush1.msra.mxu0 0.0
        %958 = vmatprep.subr.mxu0 0.0
        %959 = vmatpush1.msra.mxu0 0.0
        %960 = vmatprep.subr.mxu0 0.0
        %961 = vmatpush1.msra.mxu0 0.0
        %962 = vmatprep.subr.mxu0 0.0
        %963 = vmatpush1.msra.mxu0 0.0
        %964 = vmatprep.subr.mxu0 0.0
        %965 = vmatpush1.msra.mxu0 0.0
        %966 = vmatprep.subr.mxu0 0.0
        %967 = vmatpush1.msra.mxu0 0.0
        %968 = vmatprep.subr.mxu0 0.0
        %969 = vmatpush1.msra.mxu0 0.0
        %970 = vmatprep.subr.mxu0 0.0
        %971 = vmatpush1.msra.mxu0 0.0
        %972 = vmatprep.subr.mxu0 0.0
        %973 = vmatpush1.msra.mxu0 0.0
        %974 = vmatprep.subr.mxu0 0.0
        %975 = vmatpush1.msra.mxu0 0.0
        %976 = vmatprep.subr.mxu0 0.0
        %977 = vmatpush1.msra.mxu0 0.0
        %978 = vmatprep.subr.mxu0 0.0
        %979 = vmatpush1.msra.mxu0 0.0
        %980 = vmatprep.subr.mxu0 0.0
        %981 = vmatpush1.msra.mxu0 0.0
        %982 = vmatprep.subr.mxu0 0.0
        %983 = vmatpush1.msra.mxu0 0.0
        %984 = vmatprep.subr.mxu0 0.0
        %985 = vmatpush1.msra.mxu0 0.0
        %986 = vmatprep.subr.mxu0 0.0
        %987 = vmatpush1.msra.mxu0 0.0
        %988 = vmatprep.subr.mxu0 0.0
        %989 = vmatpush1.msra.mxu0 0.0
        %990 = vmatprep.subr.mxu0 0.0
        %991 = vmatpush1.msra.mxu0 0.0
        %992 = vmatprep.subr.mxu0 0.0
        %993 = vmatpush1.msra.mxu0 0.0
        %994 = vmatprep.subr.mxu0 0.0
        %995 = vmatpush1.msra.mxu0 0.0
        %996 = vmatprep.subr.mxu0 0.0
        %997 = vmatpush1.msra.mxu0 0.0
        %998 = vmatprep.subr.mxu0 0.0
        %999 = vmatpush1.msra.mxu0 0.0
        %1000 = vmatprep.subr.mxu0 0.0
        %1001 = vmatpush1.msra.mxu0 0.0
        %1002 = vmatprep.subr.mxu0 0.0
        %1003 = vmatpush1.msra.mxu0 0.0
        %1004 = vmatprep.subr.mxu0 0.0
        %1005 = vmatpush1.msra.mxu0 0.0
        %1006 = vmatprep.subr.mxu0 0.0
        %1007 = vmatpush1.msra.mxu0 0.0
        %1008 = vmatprep.subr.mxu0 0.0
        %1009 = vmatpush1.msra.mxu0 0.0
        %1010 = vmatprep.subr.mxu0 0.0
        %1011 = vmatpush1.msra.mxu0 0.0
        %1012 = vmatprep.subr.mxu0 0.0
        %1013 = vmatpush1.msra.mxu0 0.0
        %1014 = vmatprep.subr.mxu0 0.0
        %1015 = vmatpush1.msra.mxu0 0.0
        %1016 = vmatprep.subr.mxu0 0.0
        %1017 = vmatpush1.msra.mxu0 0.0
        %1018 = vmatprep.mubr.f32.mxu0 0.0
        %1019 = vmatmul.mubr.f32.gmra.mrb[0].mxu0 %v310
        %v1020 = vpop.f32.mrb[0].mxu0
        %v1021 = vadd.f32 0.0, %v1020
        %v1022 = vpop.f32.mrb[0].mxu0
        %v1023 = vadd.f32 0.0, %v1022
        %1024 = vmatprep.mubr.f32.mxu0 0.0
        %1025 = vmatmul.mubr.f32.gmra.mrb[0].mxu0 %v313
        %v1026 = vpop.f32.mrb[0].mxu0
        %v1027 = vadd.f32 0.0, %v1026
        %v1028 = vpop.f32.mrb[0].mxu0
        %v1029 = vadd.f32 0.0, %v1028
        %1030 = vmatprep.mubr.f32.mxu0 0.0
        %1031 = vmatmul.mubr.f32.gmra.mrb[0].mxu0 %v316
        %v1032 = vpop.f32.mrb[0].mxu0
        %v1033 = vadd.f32 0.0, %v1032
        %v1034 = vpop.f32.mrb[0].mxu0
        %v1035 = vadd.f32 0.0, %v1034
        %1036 = vmatprep.mubr.f32.mxu0 0.0
        %1037 = vmatmul.mubr.f32.gmra.mrb[0].mxu0 %v319
        %v1038 = vpop.f32.mrb[0].mxu0
        %v1039 = vadd.f32 0.0, %v1038
        %v1040 = vpop.f32.mrb[0].mxu0
        %v1041 = vadd.f32 0.0, %v1040
        %1042 = vdwg.mxu0
        %v1043 = vmax.f32 %v937, %v1021
        %v1044 = vmax.f32 %v938, %v1023
        %v1045 = vmax.f32 %v939, %v1027
        %v1046 = vmax.f32 %v940, %v1029
        %v1047 = vmax.f32 %v941, %v1033
        %v1048 = vmax.f32 %v942, %v1035
        %v1049 = vmax.f32 %v943, %v1039
        %v1050 = vmax.f32 %v944, %v1041
        %s1051 = scalar_lea.vmem %s251, 56 [#allocation2]
        %v1052 = vld [vmem:[%s1051] sm:$0xff]
        %v1053 = vsub.f32 %v1052, %v299
        %v1055 = vcombine.high %v1053, %v1053
        %v1056 = vsel %vm321, %v1053, 0
        %v1058 = vsel %vm321, %v1055, 0
        %1060 = vmatprep.subr.mxu0 %v1058
        %1061 = vmatpush1.msra.mxu0 %v1056
        %1062 = vmatprep.subr.mxu0 0.0
        %1063 = vmatpush1.msra.mxu0 0.0
        %1064 = vmatprep.subr.mxu0 0.0
        %1065 = vmatpush1.msra.mxu0 0.0
        %1066 = vmatprep.subr.mxu0 0.0
        %1067 = vmatpush1.msra.mxu0 0.0
        %1068 = vmatprep.subr.mxu0 0.0
        %1069 = vmatpush1.msra.mxu0 0.0
        %1070 = vmatprep.subr.mxu0 0.0
        %1071 = vmatpush1.msra.mxu0 0.0
        %1072 = vmatprep.subr.mxu0 0.0
        %1073 = vmatpush1.msra.mxu0 0.0
        %1074 = vmatprep.subr.mxu0 0.0
        %1075 = vmatpush1.msra.mxu0 0.0
        %1076 = vmatprep.subr.mxu0 0.0
        %1077 = vmatpush1.msra.mxu0 0.0
        %1078 = vmatprep.subr.mxu0 0.0
        %1079 = vmatpush1.msra.mxu0 0.0
        %1080 = vmatprep.subr.mxu0 0.0
        %1081 = vmatpush1.msra.mxu0 0.0
        %1082 = vmatprep.subr.mxu0 0.0
        %1083 = vmatpush1.msra.mxu0 0.0
        %1084 = vmatprep.subr.mxu0 0.0
        %1085 = vmatpush1.msra.mxu0 0.0
        %1086 = vmatprep.subr.mxu0 0.0
        %1087 = vmatpush1.msra.mxu0 0.0
        %1088 = vmatprep.subr.mxu0 0.0
        %1089 = vmatpush1.msra.mxu0 0.0
        %1090 = vmatprep.subr.mxu0 0.0
        %1091 = vmatpush1.msra.mxu0 0.0
        %1092 = vmatprep.subr.mxu0 0.0
        %1093 = vmatpush1.msra.mxu0 0.0
        %1094 = vmatprep.subr.mxu0 0.0
        %1095 = vmatpush1.msra.mxu0 0.0
        %1096 = vmatprep.subr.mxu0 0.0
        %1097 = vmatpush1.msra.mxu0 0.0
        %1098 = vmatprep.subr.mxu0 0.0
        %1099 = vmatpush1.msra.mxu0 0.0
        %1100 = vmatprep.subr.mxu0 0.0
        %1101 = vmatpush1.msra.mxu0 0.0
        %1102 = vmatprep.subr.mxu0 0.0
        %1103 = vmatpush1.msra.mxu0 0.0
        %1104 = vmatprep.subr.mxu0 0.0
        %1105 = vmatpush1.msra.mxu0 0.0
        %1106 = vmatprep.subr.mxu0 0.0
        %1107 = vmatpush1.msra.mxu0 0.0
        %1108 = vmatprep.subr.mxu0 0.0
        %1109 = vmatpush1.msra.mxu0 0.0
        %1110 = vmatprep.subr.mxu0 0.0
        %1111 = vmatpush1.msra.mxu0 0.0
        %1112 = vmatprep.subr.mxu0 0.0
        %1113 = vmatpush1.msra.mxu0 0.0
        %1114 = vmatprep.subr.mxu0 0.0
        %1115 = vmatpush1.msra.mxu0 0.0
        %1116 = vmatprep.subr.mxu0 0.0
        %1117 = vmatpush1.msra.mxu0 0.0
        %1118 = vmatprep.subr.mxu0 0.0
        %1119 = vmatpush1.msra.mxu0 0.0
        %1120 = vmatprep.subr.mxu0 0.0
        %1121 = vmatpush1.msra.mxu0 0.0
        %1122 = vmatprep.subr.mxu0 0.0
        %1123 = vmatpush1.msra.mxu0 0.0
        %1124 = vmatprep.mubr.f32.mxu0 0.0
        %1125 = vmatmul.mubr.f32.gmra.mrb[0].mxu0 %v310
        %v1126 = vpop.f32.mrb[0].mxu0
        %v1127 = vadd.f32 0.0, %v1126
        %v1128 = vpop.f32.mrb[0].mxu0
        %v1129 = vadd.f32 0.0, %v1128
        %1130 = vmatprep.mubr.f32.mxu0 0.0
        %1131 = vmatmul.mubr.f32.gmra.mrb[0].mxu0 %v313
        %v1132 = vpop.f32.mrb[0].mxu0
        %v1133 = vadd.f32 0.0, %v1132
        %v1134 = vpop.f32.mrb[0].mxu0
        %v1135 = vadd.f32 0.0, %v1134
        %1136 = vmatprep.mubr.f32.mxu0 0.0
        %1137 = vmatmul.mubr.f32.gmra.mrb[0].mxu0 %v316
        %v1138 = vpop.f32.mrb[0].mxu0
        %v1139 = vadd.f32 0.0, %v1138
        %v1140 = vpop.f32.mrb[0].mxu0
        %v1141 = vadd.f32 0.0, %v1140
        %1142 = vmatprep.mubr.f32.mxu0 0.0
        %1143 = vmatmul.mubr.f32.gmra.mrb[0].mxu0 %v319
        %v1144 = vpop.f32.mrb[0].mxu0
        %v1145 = vadd.f32 0.0, %v1144
        %v1146 = vpop.f32.mrb[0].mxu0
        %v1147 = vadd.f32 0.0, %v1146
        %1148 = vdwg.mxu0
        %v1149 = vmax.f32 %v1043, %v1127
        %v1150 = vmax.f32 %v1044, %v1129
        %v1151 = vmax.f32 %v1045, %v1133
        %v1152 = vmax.f32 %v1046, %v1135
        %v1153 = vmax.f32 %v1047, %v1139
        %v1154 = vmax.f32 %v1048, %v1141
        %v1155 = vmax.f32 %v1049, %v1145
        %v1156 = vmax.f32 %v1050, %v1147
        %s1157 = scalar_lea.vmem %s251, 64 [#allocation2]
        %v1158 = vld [vmem:[%s1157] sm:$0xff]
        %v1159 = vsub.f32 %v1158, %v299
        %v1161 = vcombine.high %v1159, %v1159
        %v1162 = vsel %vm321, %v1159, 0
        %v1164 = vsel %vm321, %v1161, 0
        %1166 = vmatprep.subr.mxu0 %v1164
        %1167 = vmatpush1.msra.mxu0 %v1162
        %1168 = vmatprep.subr.mxu0 0.0
        %1169 = vmatpush1.msra.mxu0 0.0
        %1170 = vmatprep.subr.mxu0 0.0
        %1171 = vmatpush1.msra.mxu0 0.0
        %1172 = vmatprep.subr.mxu0 0.0
        %1173 = vmatpush1.msra.mxu0 0.0
        %1174 = vmatprep.subr.mxu0 0.0
        %1175 = vmatpush1.msra.mxu0 0.0
        %1176 = vmatprep.subr.mxu0 0.0
        %1177 = vmatpush1.msra.mxu0 0.0
        %1178 = vmatprep.subr.mxu0 0.0
        %1179 = vmatpush1.msra.mxu0 0.0
        %1180 = vmatprep.subr.mxu0 0.0
        %1181 = vmatpush1.msra.mxu0 0.0
        %1182 = vmatprep.subr.mxu0 0.0
        %1183 = vmatpush1.msra.mxu0 0.0
        %1184 = vmatprep.subr.mxu0 0.0
        %1185 = vmatpush1.msra.mxu0 0.0
        %1186 = vmatprep.subr.mxu0 0.0
        %1187 = vmatpush1.msra.mxu0 0.0
        %1188 = vmatprep.subr.mxu0 0.0
        %1189 = vmatpush1.msra.mxu0 0.0
        %1190 = vmatprep.subr.mxu0 0.0
        %1191 = vmatpush1.msra.mxu0 0.0
        %1192 = vmatprep.subr.mxu0 0.0
        %1193 = vmatpush1.msra.mxu0 0.0
        %1194 = vmatprep.subr.mxu0 0.0
        %1195 = vmatpush1.msra.mxu0 0.0
        %1196 = vmatprep.subr.mxu0 0.0
        %1197 = vmatpush1.msra.mxu0 0.0
        %1198 = vmatprep.subr.mxu0 0.0
        %1199 = vmatpush1.msra.mxu0 0.0
        %1200 = vmatprep.subr.mxu0 0.0
        %1201 = vmatpush1.msra.mxu0 0.0
        %1202 = vmatprep.subr.mxu0 0.0
        %1203 = vmatpush1.msra.mxu0 0.0
        %1204 = vmatprep.subr.mxu0 0.0
        %1205 = vmatpush1.msra.mxu0 0.0
        %1206 = vmatprep.subr.mxu0 0.0
        %1207 = vmatpush1.msra.mxu0 0.0
        %1208 = vmatprep.subr.mxu0 0.0
        %1209 = vmatpush1.msra.mxu0 0.0
        %1210 = vmatprep.subr.mxu0 0.0
        %1211 = vmatpush1.msra.mxu0 0.0
        %1212 = vmatprep.subr.mxu0 0.0
        %1213 = vmatpush1.msra.mxu0 0.0
        %1214 = vmatprep.subr.mxu0 0.0
        %1215 = vmatpush1.msra.mxu0 0.0
        %1216 = vmatprep.subr.mxu0 0.0
        %1217 = vmatpush1.msra.mxu0 0.0
        %1218 = vmatprep.subr.mxu0 0.0
        %1219 = vmatpush1.msra.mxu0 0.0
        %1220 = vmatprep.subr.mxu0 0.0
        %1221 = vmatpush1.msra.mxu0 0.0
        %1222 = vmatprep.subr.mxu0 0.0
        %1223 = vmatpush1.msra.mxu0 0.0
        %1224 = vmatprep.subr.mxu0 0.0
        %1225 = vmatpush1.msra.mxu0 0.0
        %1226 = vmatprep.subr.mxu0 0.0
        %1227 = vmatpush1.msra.mxu0 0.0
        %1228 = vmatprep.subr.mxu0 0.0
        %1229 = vmatpush1.msra.mxu0 0.0
        %1230 = vmatprep.mubr.f32.mxu0 0.0
        %1231 = vmatmul.mubr.f32.gmra.mrb[0].mxu0 %v310
        %v1232 = vpop.f32.mrb[0].mxu0
        %v1233 = vadd.f32 0.0, %v1232
        %v1234 = vpop.f32.mrb[0].mxu0
        %v1235 = vadd.f32 0.0, %v1234
        %1236 = vmatprep.mubr.f32.mxu0 0.0
        %1237 = vmatmul.mubr.f32.gmra.mrb[0].mxu0 %v313
        %v1238 = vpop.f32.mrb[0].mxu0
        %v1239 = vadd.f32 0.0, %v1238
        %v1240 = vpop.f32.mrb[0].mxu0
        %v1241 = vadd.f32 0.0, %v1240
        %1242 = vmatprep.mubr.f32.mxu0 0.0
        %1243 = vmatmul.mubr.f32.gmra.mrb[0].mxu0 %v316
        %v1244 = vpop.f32.mrb[0].mxu0
        %v1245 = vadd.f32 0.0, %v1244
        %v1246 = vpop.f32.mrb[0].mxu0
        %v1247 = vadd.f32 0.0, %v1246
        %1248 = vmatprep.mubr.f32.mxu0 0.0
        %1249 = vmatmul.mubr.f32.gmra.mrb[0].mxu0 %v319
        %v1250 = vpop.f32.mrb[0].mxu0
        %v1251 = vadd.f32 0.0, %v1250
        %v1252 = vpop.f32.mrb[0].mxu0
        %v1253 = vadd.f32 0.0, %v1252
        %1254 = vdwg.mxu0
        %v1255 = vmax.f32 %v1149, %v1233
        %v1256 = vmax.f32 %v1150, %v1235
        %v1257 = vmax.f32 %v1151, %v1239
        %v1258 = vmax.f32 %v1152, %v1241
        %v1259 = vmax.f32 %v1153, %v1245
        %v1260 = vmax.f32 %v1154, %v1247
        %v1261 = vmax.f32 %v1155, %v1251
        %v1262 = vmax.f32 %v1156, %v1253
        %v1263 = vld [vmem:[%s2] sm:$0xff]
        %v1264 = vld [vmem:[%s2 + $0x8] sm:$0xff]
        %v1265 = vld [vmem:[%s2 + $0x10] sm:$0xff]
        %v1266 = vld [vmem:[%s2 + $0x18] sm:$0xff]
        %v1267 = vld [vmem:[%s4] sm:$0xff]
        %v1268 = vld [vmem:[%s4 + $0x8] sm:$0xff]
        %v1269 = vld [vmem:[%s4 + $0x10] sm:$0xff]
        %v1270 = vld [vmem:[%s4 + $0x18] sm:$0xff]
        %1272 = vset.pattern.permute.xlu0 0
        %1273 = vperm.xlu0 %1272, %v1267
        %v1274 = vpop.permute.xlu0 %1273
        %1277 = vset.pattern.permute.xlu0 0
        %1278 = vperm.xlu0 %1277, %v1268
        %v1279 = vpop.permute.xlu0 %1278
        %1282 = vset.pattern.permute.xlu0 0
        %1283 = vperm.xlu0 %1282, %v1269
        %v1284 = vpop.permute.xlu0 %1283
        %1287 = vset.pattern.permute.xlu0 0
        %1288 = vperm.xlu0 %1287, %v1270
        %v1289 = vpop.permute.xlu0 %1288
        %v1292 = vcombine.high %v299, %v299
        %v1294 = vsel %vm308, %v1263, 0
        %v1297 = vsel %vm308, %v1264, 0
        %v1300 = vsel %vm308, %v1265, 0
        %v1303 = vsel %vm308, %v1266, 0
        %v1305 = vsel %vm321, %v299, 0
        %v1307 = vsel %vm321, %v1292, 0
        %1309 = vmatprep.subr.mxu0 %v1307
        %1310 = vmatpush1.msra.mxu0 %v1305
        %1311 = vmatprep.subr.mxu0 0.0
        %1312 = vmatpush1.msra.mxu0 0.0
        %1313 = vmatprep.subr.mxu0 0.0
        %1314 = vmatpush1.msra.mxu0 0.0
        %1315 = vmatprep.subr.mxu0 0.0
        %1316 = vmatpush1.msra.mxu0 0.0
        %1317 = vmatprep.subr.mxu0 0.0
        %1318 = vmatpush1.msra.mxu0 0.0
        %1319 = vmatprep.subr.mxu0 0.0
        %1320 = vmatpush1.msra.mxu0 0.0
        %1321 = vmatprep.subr.mxu0 0.0
        %1322 = vmatpush1.msra.mxu0 0.0
        %1323 = vmatprep.subr.mxu0 0.0
        %1324 = vmatpush1.msra.mxu0 0.0
        %1325 = vmatprep.subr.mxu0 0.0
        %1326 = vmatpush1.msra.mxu0 0.0
        %1327 = vmatprep.subr.mxu0 0.0
        %1328 = vmatpush1.msra.mxu0 0.0
        %1329 = vmatprep.subr.mxu0 0.0
        %1330 = vmatpush1.msra.mxu0 0.0
        %1331 = vmatprep.subr.mxu0 0.0
        %1332 = vmatpush1.msra.mxu0 0.0
        %1333 = vmatprep.subr.mxu0 0.0
        %1334 = vmatpush1.msra.mxu0 0.0
        %1335 = vmatprep.subr.mxu0 0.0
        %1336 = vmatpush1.msra.mxu0 0.0
        %1337 = vmatprep.subr.mxu0 0.0
        %1338 = vmatpush1.msra.mxu0 0.0
        %1339 = vmatprep.subr.mxu0 0.0
        %1340 = vmatpush1.msra.mxu0 0.0
        %1341 = vmatprep.subr.mxu0 0.0
        %1342 = vmatpush1.msra.mxu0 0.0
        %1343 = vmatprep.subr.mxu0 0.0
        %1344 = vmatpush1.msra.mxu0 0.0
        %1345 = vmatprep.subr.mxu0 0.0
        %1346 = vmatpush1.msra.mxu0 0.0
        %1347 = vmatprep.subr.mxu0 0.0
        %1348 = vmatpush1.msra.mxu0 0.0
        %1349 = vmatprep.subr.mxu0 0.0
        %1350 = vmatpush1.msra.mxu0 0.0
        %1351 = vmatprep.subr.mxu0 0.0
        %1352 = vmatpush1.msra.mxu0 0.0
        %1353 = vmatprep.subr.mxu0 0.0
        %1354 = vmatpush1.msra.mxu0 0.0
        %1355 = vmatprep.subr.mxu0 0.0
        %1356 = vmatpush1.msra.mxu0 0.0
        %1357 = vmatprep.subr.mxu0 0.0
        %1358 = vmatpush1.msra.mxu0 0.0
        %1359 = vmatprep.subr.mxu0 0.0
        %1360 = vmatpush1.msra.mxu0 0.0
        %1361 = vmatprep.subr.mxu0 0.0
        %1362 = vmatpush1.msra.mxu0 0.0
        %1363 = vmatprep.subr.mxu0 0.0
        %1364 = vmatpush1.msra.mxu0 0.0
        %1365 = vmatprep.subr.mxu0 0.0
        %1366 = vmatpush1.msra.mxu0 0.0
        %1367 = vmatprep.subr.mxu0 0.0
        %1368 = vmatpush1.msra.mxu0 0.0
        %1369 = vmatprep.subr.mxu0 0.0
        %1370 = vmatpush1.msra.mxu0 0.0
        %1371 = vmatprep.subr.mxu0 0.0
        %1372 = vmatpush1.msra.mxu0 0.0
        %1373 = vmatprep.mubr.f32.mxu0 0.0
        %1374 = vmatmul.mubr.f32.gmra.mrb[0].mxu0 %v1294
        %v1375 = vpop.f32.mrb[0].mxu0
        %v1376 = vadd.f32 %v1274, %v1375
        %v1377 = vpop.f32.mrb[0].mxu0
        %v1378 = vadd.f32 %v1274, %v1377
        %1379 = vmatprep.mubr.f32.mxu0 0.0
        %1380 = vmatmul.mubr.f32.gmra.mrb[0].mxu0 %v1297
        %v1381 = vpop.f32.mrb[0].mxu0
        %v1382 = vadd.f32 %v1279, %v1381
        %v1383 = vpop.f32.mrb[0].mxu0
        %v1384 = vadd.f32 %v1279, %v1383
        %1385 = vmatprep.mubr.f32.mxu0 0.0
        %1386 = vmatmul.mubr.f32.gmra.mrb[0].mxu0 %v1300
        %v1387 = vpop.f32.mrb[0].mxu0
        %v1388 = vadd.f32 %v1284, %v1387
        %v1389 = vpop.f32.mrb[0].mxu0
        %v1390 = vadd.f32 %v1284, %v1389
        %1391 = vmatprep.mubr.f32.mxu0 0.0
        %1392 = vmatmul.mubr.f32.gmra.mrb[0].mxu0 %v1303
        %v1393 = vpop.f32.mrb[0].mxu0
        %v1394 = vadd.f32 %v1289, %v1393
        %v1395 = vpop.f32.mrb[0].mxu0
        %v1396 = vadd.f32 %v1289, %v1395
        %1397 = vdwg.mxu0
        %v1398 = vadd.f32 %v1376, %v1255
        %v1399 = vadd.f32 %v1378, %v1256
        %v1400 = vadd.f32 %v1382, %v1257
        %v1401 = vadd.f32 %v1384, %v1258
        %v1402 = vadd.f32 %v1388, %v1259
        %v1403 = vadd.f32 %v1390, %v1260
        %v1404 = vadd.f32 %v1394, %v1261
        %v1405 = vadd.f32 %v1396, %v1262
        %v1406 = vmax.f32 %v1398, 0.0
        %v1407 = vmax.f32 %v1399, 0.0
        %v1408 = vmax.f32 %v1400, 0.0
        %v1409 = vmax.f32 %v1401, 0.0
        %v1410 = vmax.f32 %v1402, 0.0
        %v1411 = vmax.f32 %v1403, 0.0
        %v1412 = vmax.f32 %v1404, 0.0
        %v1413 = vmax.f32 %v1405, 0.0
        %1414 = vst [vmem:[%s286] sm:$0xff] %v1406
        %1415 = vst [vmem:[%s286 + $0x8] sm:$0xff] %v1407
        %1416 = vst [vmem:[%s286 + $0x10] sm:$0xff] %v1408
        %1417 = vst [vmem:[%s286 + $0x18] sm:$0xff] %v1409
        %1418 = vst [vmem:[%s286 + $0x20] sm:$0xff] %v1410
        %1419 = vst [vmem:[%s286 + $0x28] sm:$0xff] %v1411
        %1420 = vst [vmem:[%s286 + $0x30] sm:$0xff] %v1412
        %1421 = vst [vmem:[%s286 + $0x38] sm:$0xff] %v1413
        %s1422 = sand.u32 %s163, 1
        %s1423 = scalar_lea.sflag [#allocation4], %s1422
        %s1424 = sand.u32 %s163, 1
        %s1425 = smul.addr %s1424, 64
        %s1426 = scalar_lea.vmem [#allocation5], %s1425
        // Predicated region
        $region45: #{tpu_custom_call.1} parent=39 // pred_check
          %p1427 = pneg %p173
        $region46: #{tpu_custom_call.1} parent=39 // pred_check_branch
          %1429 = sbr.rel (%p1427) target = $region48
        $region47: #{tpu_custom_call.1} parent=39 // pred_region
          %s1430 = smul.u32 2, %s27
          %s1432 = ssub.s32 1024, 1024
          %1433 = vsyncadd %s1423, %s1432
          %s1434 = smul.addr %s26, 8
          %s1435 = sadd.s32 %s1430, %s1434
          %s1436 = smul.addr %s1435, 128
          %s1437 = scalar_lea.hbm %s5, %s1436
          %s1438 = sshll.u32 %s1426, 4
          %s1439 = int_to_ptr.vmem [resolvable:$true] %s1438
          %1444 = dma.vmem_to_hbm [thread:$0]  %s1439, 1024, %s1437, %s1423, 256, 256, 16
        $region48: #{tpu_custom_call.1} parent=39 // pred_fallthru
          _
      $region40: #{tpu_custom_call.1} parent=5 // pred_fallthru
        _
      %p1445 = scmp.le.s32.totalorder 2, %s17
      // Predicated region
      $region49: #{tpu_custom_call.1} parent=5 // pred_check
        %p1446 = pneg %p1445
      $region50: #{tpu_custom_call.1} parent=5 // pred_check_branch
        %1448 = sbr.rel (%p1446) target = $region52
      $region51: #{tpu_custom_call.1} parent=5 // pred_region
        %s1449 = ssub.s32 %s17, 2
        // Predicated region
        $region53: #{tpu_custom_call.1} parent=51 // pred_check
          %p1450 = pneg %p179
        $region54: #{tpu_custom_call.1} parent=51 // pred_check_branch
          %1452 = sbr.rel (%p1450) target = $region56
        $region55: #{tpu_custom_call.1} parent=51 // pred_region
          %s1453 = sand.u32 %s164, 1
          %s1454 = scalar_lea.sflag [#allocation4], %s1453
          %s1455 = sand.u32 %s164, 1
          %s1456 = smul.addr %s1455, 64
          %s1457 = scalar_lea.vmem [#allocation5], %s1456
          %1458 = dma.done %s1454, 1024
        $region56: #{tpu_custom_call.1} parent=51 // pred_fallthru
          _
      $region52: #{tpu_custom_call.1} parent=5 // pred_fallthru
        _
    $region6: #{tpu_custom_call.1} parent=1 // loop_footer
      %s21 = sadd.s32 1, %s17
    $region7: #{tpu_custom_call.1} parent=1 // loop_footer_branch
      %16 = sbr.rel target = $region3
    $region8: #{tpu_custom_call.1} parent=1 // loop_exit
      _
    %1459 = vsyncpa [#allocation3], 1
    %s1460 = scalar_lea.sflag [#allocation3], 1
    %1461 = vsyncpa %s1460, 1
    %1462 = vsyncpa [#allocation4], 1
    %s1463 = scalar_lea.sflag [#allocation4], 1
    %1464 = vsyncpa %s1463, 1

</llo_original>
